<compile_context>
chip_gen: v6e
topology: v6e:2x2x1
jax: 0.10.0
libtpu: 0.0.40
codegen_flags: <defaults>
</compile_context>

<pallas_src>
import functools

import jax
import jax.numpy as jnp
from jax.experimental import pallas as pl
from jax.experimental.pallas import tpu as pltpu

BN_EPS = 1e-5

# Node-axis padding / streaming row-tile size. 256 fills the 2x256x256 MXUs of
# v6e/v7x; on v5e (4x128x128 MXUs) 128 would suffice but 256 stays correct.
N_PAD_MULTIPLE = 256
TILE_M = 256


def _round_up(v, m):
    return ((v + m - 1) // m) * m


@functools.lru_cache(maxsize=None)
def _vmem_budget_bytes():
    """Usable VMEM per TensorCore, with headroom for compiler scratch / IO buffers."""
    try:
        cap = int(pltpu.get_tpu_info().vmem_capacity_bytes)
    except Exception:
        cap = 64 * 1024 * 1024          # v7x per-core capacity: most conservative
    return int(cap * 0.85)              # ~54 MiB on v7x, ~108 MiB on v5e/v6e


def _vmem_limit_bytes(footprint):
    return min(_vmem_budget_bytes(), max(32 * 1024 * 1024, int(1.5 * footprint)))


def _resident_footprint_bytes(n_pad, d_pad, num_layers):
    a = 2 * n_pad * n_pad                                   # bf16 adjacency
    slabs = 4 * 4 * n_pad * d_pad                           # x, out + ~2 f32 live temps
    w = 2 * num_layers * d_pad * d_pad
    p = 4 * num_layers * 8 * d_pad
    return a + slabs + w + p


def _stream_footprint_bytes(n_pad, d_pad, tile_m, num_layers):
    a_blocks = 2 * 2 * tile_m * n_pad                       # double-buffered bf16 tiles
    resident = 3 * 4 * n_pad * d_pad + 2 * n_pad * d_pad    # x, out, h (f32) + xw (bf16)
    w_blocks = 2 * 2 * d_pad * d_pad
    p = 4 * num_layers * 8 * d_pad
    return a_blocks + resident + w_blocks + p + (2 << 20)


# --------------------------------------------------------------------------------------
# Variant 1: resident-A kernel (no grid, layers unrolled)
# --------------------------------------------------------------------------------------
def _mmd_gcn_resident_kernel(a_ref, x_ref, w_ref, p_ref, o_ref, *,
                             num_layers, n_true, d_true):
    """a_ref: (Np,Np) bf16; x_ref: (Np,Dp) f32; w_ref: (L,Dp,Dp) bf16 (W^T);
    p_ref: (L,8,Dp) f32 rows 0..2 = [bias,gamma,beta]; o_ref: (Np,Dp) f32."""
    n_pad, d_pad = o_ref.shape
    inv_d = jnp.float32(1.0 / d_true)
    inv_n = jnp.float32(1.0 / n_true)

    # Row mask materialised ONCE (hoisted out of the unrolled layer loop; JAX does not
    # CSE broadcast_in_dim, so an in-loop broadcast would be rebuilt per layer).
    row_mask = None
    if n_pad != n_true:
        row_mask = jnp.broadcast_to(
            (jax.lax.broadcasted_iota(jnp.int32, (n_pad, 1), 0) < n_true
             ).astype(jnp.float32),
            (n_pad, d_pad))

    a = a_ref[...]                 # padded rows/cols are exactly zero
    h = x_ref[...]

    for layer in range(num_layers):            # static unroll: L is small
        w_t = w_ref[layer]                     # (Dp, Dp) bf16 == W_l^T
        p = p_ref[layer]                       # (8, Dp) f32
        bias, gamma, beta = p[0:1, :], p[1:2, :], p[2:3, :]

        # GCNConv: bf16 MXU inputs, f32 accumulation.
        # TODO(synk): keep A in f32 if accuracy over many layers beats MXU rate.
        xw = jnp.dot(h.astype(jnp.bfloat16), w_t,
                     preferred_element_type=jnp.float32)            # h @ W^T
        agg = jnp.dot(a, xw.astype(jnp.bfloat16),
                      preferred_element_type=jnp.float32)           # A_norm @ (h W^T)
        agg = agg + bias
        if row_mask is not None:
            agg = agg * row_mask               # keep padded node rows exactly zero

        # NodeNorm 'm': subtract per-node mean over the TRUE feature count.
        agg = agg - jnp.sum(agg, axis=1, keepdims=True) * inv_d

        # BatchNorm1d (training batch stats, biased variance): fused single-pass stats
        # (E[x^2]-mu^2, clamped >= 0) and fused affine apply (scale/shift).
        mu = jnp.sum(agg, axis=0, keepdims=True) * inv_n
        ex2 = jnp.sum(agg * agg, axis=0, keepdims=True) * inv_n
        var = jnp.maximum(ex2 - mu * mu, 0.0)
        scale = jax.lax.rsqrt(var + BN_EPS) * gamma
        shift = beta - mu * scale
        h = agg * scale + shift
        # Padded feature columns return to zero because gamma/beta padding is zero.

    o_ref[...] = h


@functools.partial(jax.jit, static_argnames=("num_layers",))
def mmd_gcn_forward_resident(a_pad, x, weights, biases, gammas, betas, *, num_layers):
    """a_pad: (Np,Np) bf16 padded adjacency (see pad_adjacency); x: (N,D);
    weights: (L,D,D) PyTorch Linear layout (out,in); biases/gammas/betas: (L,D)."""
    n, d = x.shape
    n_pad = a_pad.shape[0]
    d_pad = _round_up(d, 128)

    x_p = jnp.zeros((n_pad, d_pad), jnp.float32).at[:n, :d].set(x.astype(jnp.float32))
    w_t = jnp.transpose(weights, (0, 2, 1)).astype(jnp.bfloat16)        # (L,D,D) == W^T
    w_p = jnp.zeros((num_layers, d_pad, d_pad), jnp.bfloat16).at[:, :d, :d].set(w_t)
    params = jnp.stack([biases, gammas, betas], axis=1).astype(jnp.float32)   # (L,3,D)
    p_p = jnp.zeros((num_layers, 8, d_pad), jnp.float32).at[:, :3, :d].set(params)

    kernel = functools.partial(_mmd_gcn_resident_kernel,
                               num_layers=num_layers, n_true=n, d_true=d)
    vmem_limit = _vmem_limit_bytes(_resident_footprint_bytes(n_pad, d_pad, num_layers))

    out = pl.pallas_call(
        kernel,
        out_shape=jax.ShapeDtypeStruct((n_pad, d_pad), jnp.float32),
        in_specs=[pl.BlockSpec(memory_space=pltpu.MemorySpace.VMEM)] * 4,
        out_specs=pl.BlockSpec(memory_space=pltpu.MemorySpace.VMEM),
        compiler_params=pltpu.CompilerParams(vmem_limit_bytes=vmem_limit),
    )(a_pad, x_p, w_p, p_p)
    return out[:n, :d]


# --------------------------------------------------------------------------------------
# Variant 2: row-tiled streaming kernel (grid = (L, Np/TM), A pipelined through VMEM)
# --------------------------------------------------------------------------------------
def _mmd_gcn_stream_kernel(a_ref, x_ref, w_ref, p_ref, o_ref,
                           h_ref, xw_ref, sum_ref, sqsum_ref, *,
                           num_layers, n_true, d_true, tile_m):
    l = pl.program_id(0)
    i = pl.program_id(1)
    num_tiles = pl.num_programs(1)

    inv_d = jnp.float32(1.0 / d_true)
    inv_n = jnp.float32(1.0 / n_true)

    @pl.when((l == 0) & (i == 0))
    def _():
        h_ref[...] = jnp.zeros_like(h_ref)
        sum_ref[...] = jnp.zeros_like(sum_ref)
        sqsum_ref[...] = jnp.zeros_like(sqsum_ref)

    # Layer prologue (first row tile): apply the PREVIOUS layer's BatchNorm affine to
    # the carried pre-BN activations (fused into forming xw = h_bn @ W_l^T), then reset
    # the column-statistics accumulators for this layer.
    @pl.when(i == 0)
    def _():
        p_prev = p_ref[jnp.maximum(l - 1, 0)]               # (8, Dp)
        gamma_p, beta_p = p_prev[1:2, :], p_prev[2:3, :]
        mu = sum_ref[...] * inv_n
        var = jnp.maximum(sqsum_ref[...] * inv_n - mu * mu, 0.0)
        scale = jax.lax.rsqrt(var + BN_EPS) * gamma_p
        shift = beta_p - mu * scale
        # Arithmetic blend instead of a select: at l == 0 use the raw node features.
        is_first = (l == 0).astype(jnp.float32)
        h_bn = x_ref[...] * is_first + (h_ref[...] * scale + shift) * (1.0 - is_first)
        xw_ref[...] = jnp.dot(h_bn.astype(jnp.bfloat16), w_ref[0],
                              preferred_element_type=jnp.float32).astype(jnp.bfloat16)
        sum_ref[...] = jnp.zeros_like(sum_ref)
        sqsum_ref[...] = jnp.zeros_like(sqsum_ref)

    bias = p_ref[l][0:1, :]

    # GCNConv on this row tile: A[tile,:] @ (h W^T) + bias   (bf16 MXU, f32 acc).
    agg = jnp.dot(a_ref[...], xw_ref[...], preferred_element_type=jnp.float32)
    agg = agg + bias

    # Zero padded node rows so they don't pollute the BatchNorm statistics.
    row0 = i * tile_m
    row_ids = row0 + jax.lax.broadcasted_iota(jnp.int32, (tile_m, 1), 0)
    agg = agg * (row_ids < n_true).astype(jnp.float32)

    # NodeNorm 'm': subtract per-node mean over the TRUE feature count.
    agg = agg - jnp.sum(agg, axis=1, keepdims=True) * inv_d

    # Carry the pre-BN activation; accumulate BatchNorm column statistics.
    h_ref[pl.ds(pl.multiple_of(row0, tile_m), tile_m), :] = agg
    sum_ref[...] += jnp.sum(agg, axis=0, keepdims=True)
    sqsum_ref[...] += jnp.sum(agg * agg, axis=0, keepdims=True)

    # Epilogue: apply the LAST layer's BatchNorm and emit the full output once.
    @pl.when((l == num_layers - 1) & (i == num_tiles - 1))
    def _():
        p_last = p_ref[num_layers - 1]
        gamma_l, beta_l = p_last[1:2, :], p_last[2:3, :]
        mu = sum_ref[...] * inv_n
        var = jnp.maximum(sqsum_ref[...] * inv_n - mu * mu, 0.0)
        scale = jax.lax.rsqrt(var + BN_EPS) * gamma_l
        shift = beta_l - mu * scale
        o_ref[...] = h_ref[...] * scale + shift


@functools.partial(jax.jit, static_argnames=("num_layers", "tile_m"))
def mmd_gcn_forward_streaming(a_pad, x, weights, biases, gammas, betas, *,
                              num_layers, tile_m=TILE_M):
    n, d = x.shape
    n_pad = a_pad.shape[0]
    if n_pad % tile_m != 0:
        raise ValueError(f"padded node count {n_pad} must be a multiple of {tile_m}")
    d_pad = _round_up(d, 128)
    num_tiles = n_pad // tile_m

    x_p = jnp.zeros((n_pad, d_pad), jnp.float32).at[:n, :d].set(x.astype(jnp.float32))
    w_t = jnp.transpose(weights, (0, 2, 1)).astype(jnp.bfloat16)
    w_p = jnp.zeros((num_layers, d_pad, d_pad), jnp.bfloat16).at[:, :d, :d].set(w_t)
    params = jnp.stack([biases, gammas, betas], axis=1).astype(jnp.float32)
    p_p = jnp.zeros((num_layers, 8, d_pad), jnp.float32).at[:, :3, :d].set(params)

    kernel = functools.partial(_mmd_gcn_stream_kernel, num_layers=num_layers,
                               n_true=n, d_true=d, tile_m=tile_m)
    vmem_limit = _vmem_limit_bytes(
        _stream_footprint_bytes(n_pad, d_pad, tile_m, num_layers))

    # TODO(synk): split the row-tile axis across v7x's two TensorCores (per-core partial
    # BN stats + combine pass); the stat accumulation keeps this grid "arbitrary".
    out = pl.pallas_call(
        kernel,
        out_shape=jax.ShapeDtypeStruct((n_pad, d_pad), jnp.float32),
        grid_spec=pltpu.PrefetchScalarGridSpec(
            num_scalar_prefetch=0,
            grid=(num_layers, num_tiles),
            in_specs=[
                pl.BlockSpec((tile_m, n_pad), lambda l, i: (i, 0)),          # A (streamed)
                pl.BlockSpec((n_pad, d_pad), lambda l, i: (0, 0)),           # x (resident)
                pl.BlockSpec((1, d_pad, d_pad), lambda l, i: (l, 0, 0)),     # W^T layer l
                pl.BlockSpec((num_layers, 8, d_pad), lambda l, i: (0, 0, 0)),  # params
            ],
            out_specs=pl.BlockSpec((n_pad, d_pad), lambda l, i: (0, 0)),
            scratch_shapes=[
                pltpu.VMEM((n_pad, d_pad), jnp.float32),    # h: pre-BN activation carry
                pltpu.VMEM((n_pad, d_pad), jnp.bfloat16),   # xw = h_bn @ W^T
                pltpu.VMEM((1, d_pad), jnp.float32),        # BN column sum
                pltpu.VMEM((1, d_pad), jnp.float32),        # BN column sum of squares
            ]),
        compiler_params=pltpu.CompilerParams(
            dimension_semantics=("arbitrary", "arbitrary"),
            vmem_limit_bytes=vmem_limit),
    )(a_pad, x_p, w_p, p_p)
    return out[:n, :d]


# --------------------------------------------------------------------------------------
# Dispatcher + graph glue + references
# --------------------------------------------------------------------------------------
def mmd_gcn_forward(a_pad, x, weights, biases, gammas, betas, *, num_layers):
    """Auto-selects resident-A (fits VMEM budget) or row-tiled streaming kernel."""
    n_pad = a_pad.shape[0]
    d_pad = _round_up(x.shape[1], 128)
    budget = _vmem_budget_bytes()
    if int(1.2 * _resident_footprint_bytes(n_pad, d_pad, num_layers)) <= budget:
        return mmd_gcn_forward_resident(a_pad, x, weights, biases, gammas, betas,
                                        num_layers=num_layers)
    if int(1.2 * _stream_footprint_bytes(n_pad, d_pad, TILE_M, num_layers)) > budget:
        raise ValueError("graph too large even for the streaming kernel's resident "
                         "(Np, Dp) state; shrink the graph or tile the feature axis")
    return mmd_gcn_forward_streaming(a_pad, x, weights, biases, gammas, betas,
                                     num_layers=num_layers, tile_m=TILE_M)


def build_norm_adj(edge_index, num_nodes):
    """Dense symmetric-normalized adjacency (with self loops), matching GCNConv:
    out[i] = sum_{e: col[e]==i} deg^-1/2[row[e]] * deg^-1/2[col[e]] * x[row[e]]."""
    self_loops = jnp.arange(num_nodes, dtype=edge_index.dtype)
    row = jnp.concatenate([edge_index[0], self_loops])
    col = jnp.concatenate([edge_index[1], self_loops])
    deg = jnp.zeros((num_nodes,), jnp.float32).at[col].add(1.0)
    deg_inv_sqrt = jnp.where(deg > 0, deg ** -0.5, 0.0)
    norm = deg_inv_sqrt[row] * deg_inv_sqrt[col]
    return jnp.zeros((num_nodes, num_nodes), jnp.float32).at[col, row].add(norm)


def pad_adjacency(a_norm, n_pad=None):
    """Pad + cast the adjacency ONCE per graph (outside the per-forward jit path):
    lane-dense, multiple-of-256 node axis, bf16 for the MXU."""
    n = a_norm.shape[0]
    if n_pad is None:
        n_pad = _round_up(n, N_PAD_MULTIPLE)
    return jnp.zeros((n_pad, n_pad), jnp.bfloat16).at[:n, :n].set(
        a_norm.astype(jnp.bfloat16))


def reference_forward_f32(a_norm, x, weights, biases, gammas, betas):
    """Pure-f32 reference matching the PyTorch module exactly (semantic sanity)."""
    h = x.astype(jnp.float32)
    for l in range(weights.shape[0]):
        h = a_norm @ (h @ weights[l].T) + biases[l]
        h = h - jnp.mean(h, axis=1, keepdims=True)
        mu = jnp.mean(h, axis=0, keepdims=True)
        var = jnp.mean((h - mu) ** 2, axis=0, keepdims=True)
        h = (h - mu) / jnp.sqrt(var + BN_EPS) * gammas[l] + betas[l]
    return h


def reference_forward_mirror(a_norm, x, weights, biases, gammas, betas):
    """Reference mirroring the kernels' dtype policy (bf16 MXU inputs, f32 acc, fused
    BN stats/affine) — strict check of the kernel implementations."""
    a_bf = a_norm.astype(jnp.bfloat16)
    d = x.shape[1]
    h = x.astype(jnp.float32)
    for l in range(weights.shape[0]):
        w_t = weights[l].T.astype(jnp.bfloat16)
        xw = jnp.dot(h.astype(jnp.bfloat16), w_t, preferred_element_type=jnp.float32)
        h = jnp.dot(a_bf, xw.astype(jnp.bfloat16),
                    preferred_element_type=jnp.float32) + biases[l]
        h = h - jnp.sum(h, axis=1, keepdims=True) / d
        mu = jnp.mean(h, axis=0, keepdims=True)
        var = jnp.maximum(jnp.mean(h * h, axis=0, keepdims=True) - mu * mu, 0.0)
        scale = jax.lax.rsqrt(var + BN_EPS) * gammas[l]
        h = h * scale + (betas[l] - mu * scale)
    return h


if __name__ == "__main__":
    root = jax.random.PRNGKey(0)

    def make_inputs(key, n, d, num_layers):
        kx, kw, kb, kg, ke = jax.random.split(key, 5)
        x = jax.random.normal(kx, (n, d), dtype=jnp.float32)
        src = jnp.arange(n, dtype=jnp.int32)
        dst = (src + 1) % n
        edge_index = jnp.stack([jnp.concatenate([src, dst]),
                                jnp.concatenate([dst, src])], axis=0)   # ring, both dirs
        bound = 1.0 / jnp.sqrt(d)
        weights = jax.random.uniform(kw, (num_layers, d, d), minval=-bound,
                                     maxval=bound, dtype=jnp.float32)
        biases = 0.1 * jax.random.normal(kb, (num_layers, d), dtype=jnp.float32)
        gammas = 1.0 + 0.1 * jax.random.normal(kg, (num_layers, d), dtype=jnp.float32)
        betas = 0.1 * jax.random.normal(ke, (num_layers, d), dtype=jnp.float32)
        return x, edge_index, weights, biases, gammas, betas

    def check(out, a, x, w, b, g, bt):
        mirror = reference_forward_mirror(a, x, w, b, g, bt)
        assert jnp.allclose(out, mirror, atol=2e-3, rtol=2e-3), (
            float(jnp.max(jnp.abs(out - mirror))))
        ref = reference_forward_f32(a, x, w, b, g, bt)
        assert jnp.allclose(out, ref, atol=1e-1, rtol=1e-1), (
            float(jnp.max(jnp.abs(out - ref))))

    # --- Case 1: tiny graph (N not a padding multiple) -> resident-A kernel ---
    N, D, L = 18, 32, 3
    x, ei, w, b, g, bt = make_inputs(root, N, D, L)
    a = build_norm_adj(ei, N)
    a_pad = pad_adjacency(a)                       # built once per graph
    out = jax.block_until_ready(mmd_gcn_forward(a_pad, x, w, b, g, bt, num_layers=L))
    assert out.shape == (N, D)
    check(out, a, x, w, b, g, bt)

    # --- Case 2: larger graph forced through the row-tiled streaming kernel
    #     (2 row tiles of 256; exercises A pipelining + partial BN stats) ---
    N2, D2, L2 = 300, 32, 2
    x2, ei2, w2, b2, g2, bt2 = make_inputs(jax.random.fold_in(root, 1), N2, D2, L2)
    a2 = build_norm_adj(ei2, N2)
    a2_pad = pad_adjacency(a2)
    out2 = jax.block_until_ready(
        mmd_gcn_forward_streaming(a2_pad, x2, w2, b2, g2, bt2, num_layers=L2))
    assert out2.shape == (N2, D2)
    check(out2, a2, x2, w2, b2, g2, bt2)

    print("KERNEL_OK")
</pallas_src>

<mosaic_0001>
module attributes {stable_mosaic.version = 11 : i64} {
  func.func @_mmd_gcn_resident_kernel(%arg0: memref<256x256xbf16, #tpu.memory_space<vmem>>, %arg1: memref<256x128xf32, #tpu.memory_space<vmem>>, %arg2: memref<3x128x128xbf16, #tpu.memory_space<vmem>>, %arg3: memref<3x8x128xf32, #tpu.memory_space<vmem>>, %arg4: memref<256x128xf32, #tpu.memory_space<vmem>>) attributes {dimension_semantics = [], scalar_prefetch = 0 : i64, scratch_operands = 0 : i64, tpu.core_type = #tpu.core_type<tc>} {
    %0 = tpu.iota {dimensions = array<i32: 0>} : vector<256x1xi32>
    %c18_i32 = arith.constant 18 : i32
    %1 = vector.broadcast %c18_i32 : i32 to vector<256x1xi32>
    %2 = arith.cmpi slt, %0, %1 : vector<256x1xi32>
    %3 = arith.extui %2 : vector<256x1xi1> to vector<256x1xi32>
    %4 = arith.sitofp %3 : vector<256x1xi32> to vector<256x1xf32>
    %5 = vector.shape_cast %4 : vector<256x1xf32> to vector<256x1xf32>
    %6 = vector.broadcast %5 : vector<256x1xf32> to vector<256x128xf32>
    %c0 = arith.constant 0 : index
    %c0_0 = arith.constant 0 : index
    %7 = vector.load %arg0[%c0, %c0_0] : memref<256x256xbf16, #tpu.memory_space<vmem>>, vector<256x256xbf16>
    %c0_1 = arith.constant 0 : index
    %c0_2 = arith.constant 0 : index
    %8 = vector.load %arg1[%c0_1, %c0_2] : memref<256x128xf32, #tpu.memory_space<vmem>>, vector<256x128xf32>
    %c0_3 = arith.constant 0 : index
    %c0_4 = arith.constant 0 : index
    %c0_5 = arith.constant 0 : index
    %9 = vector.load %arg2[%c0_3, %c0_4, %c0_5] : memref<3x128x128xbf16, #tpu.memory_space<vmem>>, vector<1x128x128xbf16>
    %10 = vector.shape_cast %9 : vector<1x128x128xbf16> to vector<128x128xbf16>
    %c0_6 = arith.constant 0 : index
    %c0_7 = arith.constant 0 : index
    %c0_8 = arith.constant 0 : index
    %11 = vector.load %arg3[%c0_6, %c0_7, %c0_8] : memref<3x8x128xf32, #tpu.memory_space<vmem>>, vector<1x8x128xf32>
    %12 = vector.shape_cast %11 : vector<1x8x128xf32> to vector<8x128xf32>
    %13 = vector.extract_strided_slice %12 {offsets = [0, 0], sizes = [1, 128], strides = [1, 1]} : vector<8x128xf32> to vector<1x128xf32>
    %14 = vector.extract_strided_slice %12 {offsets = [1, 0], sizes = [1, 128], strides = [1, 1]} : vector<8x128xf32> to vector<1x128xf32>
    %15 = vector.extract_strided_slice %12 {offsets = [2, 0], sizes = [1, 128], strides = [1, 1]} : vector<8x128xf32> to vector<1x128xf32>
    %16 = arith.truncf %8 : vector<256x128xf32> to vector<256x128xbf16>
    %cst = arith.constant dense<0.000000e+00> : vector<256x128xf32>
    %17 = tpu.matmul %16, %10, %cst {dimension_numbers = #tpu.dot_dimension_numbers<[1], [0], [0], [1], [0, 0, 1, 1], [], []>} : vector<256x128xbf16>, vector<128x128xbf16>, vector<256x128xf32> -> vector<256x128xf32>
    %18 = arith.truncf %17 : vector<256x128xf32> to vector<256x128xbf16>
    %cst_9 = arith.constant dense<0.000000e+00> : vector<256x128xf32>
    %19 = tpu.matmul %7, %18, %cst_9 {dimension_numbers = #tpu.dot_dimension_numbers<[1], [0], [0], [1], [0, 0, 1, 1], [], []>} : vector<256x256xbf16>, vector<256x128xbf16>, vector<256x128xf32> -> vector<256x128xf32>
    %20 = vector.broadcast %13 : vector<1x128xf32> to vector<256x128xf32>
    %21 = arith.addf %19, %20 : vector<256x128xf32>
    %22 = arith.mulf %21, %6 : vector<256x128xf32>
    %cst_10 = arith.constant dense<0.000000e+00> : vector<256xf32>
    %23 = vector.multi_reduction <add>, %22, %cst_10 [1] : vector<256x128xf32> to vector<256xf32>
    %24 = vector.shape_cast %23 : vector<256xf32> to vector<256x1xf32>
    %cst_11 = arith.constant 3.125000e-02 : f32
    %25 = vector.broadcast %cst_11 : f32 to vector<256x1xf32>
    %26 = arith.mulf %24, %25 : vector<256x1xf32>
    %27 = vector.broadcast %26 : vector<256x1xf32> to vector<256x128xf32>
    %28 = arith.subf %22, %27 : vector<256x128xf32>
    %cst_12 = arith.constant dense<0.000000e+00> : vector<128xf32>
    %29 = vector.multi_reduction <add>, %28, %cst_12 [0] : vector<256x128xf32> to vector<128xf32>
    %30 = vector.shape_cast %29 : vector<128xf32> to vector<1x128xf32>
    %cst_13 = arith.constant 0.055555556 : f32
    %31 = vector.broadcast %cst_13 : f32 to vector<1x128xf32>
    %32 = arith.mulf %30, %31 : vector<1x128xf32>
    %33 = arith.mulf %28, %28 : vector<256x128xf32>
    %cst_14 = arith.constant dense<0.000000e+00> : vector<128xf32>
    %34 = vector.multi_reduction <add>, %33, %cst_14 [0] : vector<256x128xf32> to vector<128xf32>
    %35 = vector.shape_cast %34 : vector<128xf32> to vector<1x128xf32>
    %cst_15 = arith.constant 0.055555556 : f32
    %36 = vector.broadcast %cst_15 : f32 to vector<1x128xf32>
    %37 = arith.mulf %35, %36 : vector<1x128xf32>
    %38 = arith.mulf %32, %32 : vector<1x128xf32>
    %39 = arith.subf %37, %38 : vector<1x128xf32>
    %cst_16 = arith.constant 0.000000e+00 : f32
    %40 = vector.broadcast %cst_16 : f32 to vector<1x128xf32>
    %41 = arith.maximumf %39, %40 : vector<1x128xf32>
    %cst_17 = arith.constant 9.99999974E-6 : f32
    %42 = vector.broadcast %cst_17 : f32 to vector<1x128xf32>
    %43 = arith.addf %41, %42 : vector<1x128xf32>
    %44 = math.rsqrt %43 : vector<1x128xf32>
    %45 = arith.mulf %44, %14 : vector<1x128xf32>
    %46 = arith.mulf %32, %45 : vector<1x128xf32>
    %47 = arith.subf %15, %46 : vector<1x128xf32>
    %48 = vector.broadcast %45 : vector<1x128xf32> to vector<256x128xf32>
    %49 = arith.mulf %28, %48 : vector<256x128xf32>
    %50 = vector.broadcast %47 : vector<1x128xf32> to vector<256x128xf32>
    %51 = arith.addf %49, %50 : vector<256x128xf32>
    %c1 = arith.constant 1 : index
    %c0_18 = arith.constant 0 : index
    %c0_19 = arith.constant 0 : index
    %52 = vector.load %arg2[%c1, %c0_18, %c0_19] : memref<3x128x128xbf16, #tpu.memory_space<vmem>>, vector<1x128x128xbf16>
    %53 = vector.shape_cast %52 : vector<1x128x128xbf16> to vector<128x128xbf16>
    %c1_20 = arith.constant 1 : index
    %c0_21 = arith.constant 0 : index
    %c0_22 = arith.constant 0 : index
    %54 = vector.load %arg3[%c1_20, %c0_21, %c0_22] : memref<3x8x128xf32, #tpu.memory_space<vmem>>, vector<1x8x128xf32>
    %55 = vector.shape_cast %54 : vector<1x8x128xf32> to vector<8x128xf32>
    %56 = vector.extract_strided_slice %55 {offsets = [0, 0], sizes = [1, 128], strides = [1, 1]} : vector<8x128xf32> to vector<1x128xf32>
    %57 = vector.extract_strided_slice %55 {offsets = [1, 0], sizes = [1, 128], strides = [1, 1]} : vector<8x128xf32> to vector<1x128xf32>
    %58 = vector.extract_strided_slice %55 {offsets = [2, 0], sizes = [1, 128], strides = [1, 1]} : vector<8x128xf32> to vector<1x128xf32>
    %59 = arith.truncf %51 : vector<256x128xf32> to vector<256x128xbf16>
    %cst_23 = arith.constant dense<0.000000e+00> : vector<256x128xf32>
    %60 = tpu.matmul %59, %53, %cst_23 {dimension_numbers = #tpu.dot_dimension_numbers<[1], [0], [0], [1], [0, 0, 1, 1], [], []>} : vector<256x128xbf16>, vector<128x128xbf16>, vector<256x128xf32> -> vector<256x128xf32>
    %61 = arith.truncf %60 : vector<256x128xf32> to vector<256x128xbf16>
    %cst_24 = arith.constant dense<0.000000e+00> : vector<256x128xf32>
    %62 = tpu.matmul %7, %61, %cst_24 {dimension_numbers = #tpu.dot_dimension_numbers<[1], [0], [0], [1], [0, 0, 1, 1], [], []>} : vector<256x256xbf16>, vector<256x128xbf16>, vector<256x128xf32> -> vector<256x128xf32>
    %63 = vector.broadcast %56 : vector<1x128xf32> to vector<256x128xf32>
    %64 = arith.addf %62, %63 : vector<256x128xf32>
    %65 = arith.mulf %64, %6 : vector<256x128xf32>
    %cst_25 = arith.constant dense<0.000000e+00> : vector<256xf32>
    %66 = vector.multi_reduction <add>, %65, %cst_25 [1] : vector<256x128xf32> to vector<256xf32>
    %67 = vector.shape_cast %66 : vector<256xf32> to vector<256x1xf32>
    %cst_26 = arith.constant 3.125000e-02 : f32
    %68 = vector.broadcast %cst_26 : f32 to vector<256x1xf32>
    %69 = arith.mulf %67, %68 : vector<256x1xf32>
    %70 = vector.broadcast %69 : vector<256x1xf32> to vector<256x128xf32>
    %71 = arith.subf %65, %70 : vector<256x128xf32>
    %cst_27 = arith.constant dense<0.000000e+00> : vector<128xf32>
    %72 = vector.multi_reduction <add>, %71, %cst_27 [0] : vector<256x128xf32> to vector<128xf32>
    %73 = vector.shape_cast %72 : vector<128xf32> to vector<1x128xf32>
    %cst_28 = arith.constant 0.055555556 : f32
    %74 = vector.broadcast %cst_28 : f32 to vector<1x128xf32>
    %75 = arith.mulf %73, %74 : vector<1x128xf32>
    %76 = arith.mulf %71, %71 : vector<256x128xf32>
    %cst_29 = arith.constant dense<0.000000e+00> : vector<128xf32>
    %77 = vector.multi_reduction <add>, %76, %cst_29 [0] : vector<256x128xf32> to vector<128xf32>
    %78 = vector.shape_cast %77 : vector<128xf32> to vector<1x128xf32>
    %cst_30 = arith.constant 0.055555556 : f32
    %79 = vector.broadcast %cst_30 : f32 to vector<1x128xf32>
    %80 = arith.mulf %78, %79 : vector<1x128xf32>
    %81 = arith.mulf %75, %75 : vector<1x128xf32>
    %82 = arith.subf %80, %81 : vector<1x128xf32>
    %cst_31 = arith.constant 0.000000e+00 : f32
    %83 = vector.broadcast %cst_31 : f32 to vector<1x128xf32>
    %84 = arith.maximumf %82, %83 : vector<1x128xf32>
    %cst_32 = arith.constant 9.99999974E-6 : f32
    %85 = vector.broadcast %cst_32 : f32 to vector<1x128xf32>
    %86 = arith.addf %84, %85 : vector<1x128xf32>
    %87 = math.rsqrt %86 : vector<1x128xf32>
    %88 = arith.mulf %87, %57 : vector<1x128xf32>
    %89 = arith.mulf %75, %88 : vector<1x128xf32>
    %90 = arith.subf %58, %89 : vector<1x128xf32>
    %91 = vector.broadcast %88 : vector<1x128xf32> to vector<256x128xf32>
    %92 = arith.mulf %71, %91 : vector<256x128xf32>
    %93 = vector.broadcast %90 : vector<1x128xf32> to vector<256x128xf32>
    %94 = arith.addf %92, %93 : vector<256x128xf32>
    %c2 = arith.constant 2 : index
    %c0_33 = arith.constant 0 : index
    %c0_34 = arith.constant 0 : index
    %95 = vector.load %arg2[%c2, %c0_33, %c0_34] : memref<3x128x128xbf16, #tpu.memory_space<vmem>>, vector<1x128x128xbf16>
    %96 = vector.shape_cast %95 : vector<1x128x128xbf16> to vector<128x128xbf16>
    %c2_35 = arith.constant 2 : index
    %c0_36 = arith.constant 0 : index
    %c0_37 = arith.constant 0 : index
    %97 = vector.load %arg3[%c2_35, %c0_36, %c0_37] : memref<3x8x128xf32, #tpu.memory_space<vmem>>, vector<1x8x128xf32>
    %98 = vector.shape_cast %97 : vector<1x8x128xf32> to vector<8x128xf32>
    %99 = vector.extract_strided_slice %98 {offsets = [0, 0], sizes = [1, 128], strides = [1, 1]} : vector<8x128xf32> to vector<1x128xf32>
    %100 = vector.extract_strided_slice %98 {offsets = [1, 0], sizes = [1, 128], strides = [1, 1]} : vector<8x128xf32> to vector<1x128xf32>
    %101 = vector.extract_strided_slice %98 {offsets = [2, 0], sizes = [1, 128], strides = [1, 1]} : vector<8x128xf32> to vector<1x128xf32>
    %102 = arith.truncf %94 : vector<256x128xf32> to vector<256x128xbf16>
    %cst_38 = arith.constant dense<0.000000e+00> : vector<256x128xf32>
    %103 = tpu.matmul %102, %96, %cst_38 {dimension_numbers = #tpu.dot_dimension_numbers<[1], [0], [0], [1], [0, 0, 1, 1], [], []>} : vector<256x128xbf16>, vector<128x128xbf16>, vector<256x128xf32> -> vector<256x128xf32>
    %104 = arith.truncf %103 : vector<256x128xf32> to vector<256x128xbf16>
    %cst_39 = arith.constant dense<0.000000e+00> : vector<256x128xf32>
    %105 = tpu.matmul %7, %104, %cst_39 {dimension_numbers = #tpu.dot_dimension_numbers<[1], [0], [0], [1], [0, 0, 1, 1], [], []>} : vector<256x256xbf16>, vector<256x128xbf16>, vector<256x128xf32> -> vector<256x128xf32>
    %106 = vector.broadcast %99 : vector<1x128xf32> to vector<256x128xf32>
    %107 = arith.addf %105, %106 : vector<256x128xf32>
    %108 = arith.mulf %107, %6 : vector<256x128xf32>
    %cst_40 = arith.constant dense<0.000000e+00> : vector<256xf32>
    %109 = vector.multi_reduction <add>, %108, %cst_40 [1] : vector<256x128xf32> to vector<256xf32>
    %110 = vector.shape_cast %109 : vector<256xf32> to vector<256x1xf32>
    %cst_41 = arith.constant 3.125000e-02 : f32
    %111 = vector.broadcast %cst_41 : f32 to vector<256x1xf32>
    %112 = arith.mulf %110, %111 : vector<256x1xf32>
    %113 = vector.broadcast %112 : vector<256x1xf32> to vector<256x128xf32>
    %114 = arith.subf %108, %113 : vector<256x128xf32>
    %cst_42 = arith.constant dense<0.000000e+00> : vector<128xf32>
    %115 = vector.multi_reduction <add>, %114, %cst_42 [0] : vector<256x128xf32> to vector<128xf32>
    %116 = vector.shape_cast %115 : vector<128xf32> to vector<1x128xf32>
    %cst_43 = arith.constant 0.055555556 : f32
    %117 = vector.broadcast %cst_43 : f32 to vector<1x128xf32>
    %118 = arith.mulf %116, %117 : vector<1x128xf32>
    %119 = arith.mulf %114, %114 : vector<256x128xf32>
    %cst_44 = arith.constant dense<0.000000e+00> : vector<128xf32>
    %120 = vector.multi_reduction <add>, %119, %cst_44 [0] : vector<256x128xf32> to vector<128xf32>
    %121 = vector.shape_cast %120 : vector<128xf32> to vector<1x128xf32>
    %cst_45 = arith.constant 0.055555556 : f32
    %122 = vector.broadcast %cst_45 : f32 to vector<1x128xf32>
    %123 = arith.mulf %121, %122 : vector<1x128xf32>
    %124 = arith.mulf %118, %118 : vector<1x128xf32>
    %125 = arith.subf %123, %124 : vector<1x128xf32>
    %cst_46 = arith.constant 0.000000e+00 : f32
    %126 = vector.broadcast %cst_46 : f32 to vector<1x128xf32>
    %127 = arith.maximumf %125, %126 : vector<1x128xf32>
    %cst_47 = arith.constant 9.99999974E-6 : f32
    %128 = vector.broadcast %cst_47 : f32 to vector<1x128xf32>
    %129 = arith.addf %127, %128 : vector<1x128xf32>
    %130 = math.rsqrt %129 : vector<1x128xf32>
    %131 = arith.mulf %130, %100 : vector<1x128xf32>
    %132 = arith.mulf %118, %131 : vector<1x128xf32>
    %133 = arith.subf %101, %132 : vector<1x128xf32>
    %134 = vector.broadcast %131 : vector<1x128xf32> to vector<256x128xf32>
    %135 = arith.mulf %114, %134 : vector<256x128xf32>
    %136 = vector.broadcast %133 : vector<1x128xf32> to vector<256x128xf32>
    %137 = arith.addf %135, %136 : vector<256x128xf32>
    %c0_48 = arith.constant 0 : index
    %c0_49 = arith.constant 0 : index
    %138 = vector.load %arg4[%c0_48, %c0_49] : memref<256x128xf32, #tpu.memory_space<vmem>>, vector<256x128xf32>
    tpu.vector_store %arg4[%c0_48, %c0_49], %137 {strides = array<i32>} : memref<256x128xf32, #tpu.memory_space<vmem>>, vector<256x128xf32>,
    return
  }
}

</mosaic_0001>

<llo_original>
// kernel: mmd_gcn_forward_resident.1
$region0: #{mmd_gcn_forward_resident.1}
  #allocation0 [shape = 'u32[]', space=smem, size = 0x4, offset = 0x4, fixed_abs, tag = 'smem constant byte address 0x4 - core index']
  #allocation1 [shape = 'u32[144,128]{1,0:T(1,128)}', space=vmem, size = 0x12000, scoped, tag = 'internal scratch']
  %s0 = inlined_call_operand.vmem [shape: bf16[256,256], index: 0, kind: input, shape index: {}]
  %s1 = inlined_call_operand.vmem [shape: f32[256,128], index: 1, kind: input, shape index: {}]
  %s2 = inlined_call_operand.vmem [shape: bf16[3,128,128], index: 2, kind: input, shape index: {}]
  %s3 = inlined_call_operand.vmem [shape: f32[3,8,128], index: 3, kind: input, shape index: {}]
  %s4 = inlined_call_operand.vmem [shape: f32[256,128], index: 4, kind: output, shape index: {}]
  %s5 = sld [smem:[#allocation0]]
  $region26: #{mmd_gcn_forward_resident.1} parent=0
    _
  %s7 = ssub.s32 1, %s5
  %s8 = scalar_select 0, %s7, %s5
  // Predicated region
  $region2: #{mmd_gcn_forward_resident.1} parent=0 // pred_check
    _
  $region3: #{mmd_gcn_forward_resident.1} parent=0 // pred_check_branch
    %10 = sbr.rel (0) target = $region5
  $region4: #{mmd_gcn_forward_resident.1} parent=0 // pred_region
    _
  $region5: #{mmd_gcn_forward_resident.1} parent=0 // pred_fallthru
    _
  // Predicated region
  $region6: #{mmd_gcn_forward_resident.1} parent=0 // pred_check
    _
  $region7: #{mmd_gcn_forward_resident.1} parent=0 // pred_check_branch
    %12 = sbr.rel (0) target = $region9
  $region8: #{mmd_gcn_forward_resident.1} parent=0 // pred_region
    _
  $region9: #{mmd_gcn_forward_resident.1} parent=0 // pred_fallthru
    _
  // Predicated region
  $region10: #{mmd_gcn_forward_resident.1} parent=0 // pred_check
    _
  $region11: #{mmd_gcn_forward_resident.1} parent=0 // pred_check_branch
    %14 = sbr.rel (0) target = $region13
  $region12: #{mmd_gcn_forward_resident.1} parent=0 // pred_region
    _
  $region13: #{mmd_gcn_forward_resident.1} parent=0 // pred_fallthru
    _
  // Predicated region
  $region14: #{mmd_gcn_forward_resident.1} parent=0 // pred_check
    _
  $region15: #{mmd_gcn_forward_resident.1} parent=0 // pred_check_branch
    %16 = sbr.rel (0) target = $region17
  $region16: #{mmd_gcn_forward_resident.1} parent=0 // pred_region
    _
  $region17: #{mmd_gcn_forward_resident.1} parent=0 // pred_fallthru
    _
  %v18 = vlaneseq
  %v19 = vshrl.u32 %v18, 7
  %v20 = vadd.s32 %v19, 8
  %v21 = vadd.s32 %v19, 16
  %v22 = vadd.s32 %v19, 24
  %v23 = vadd.s32 %v19, 32
  %v24 = vadd.s32 %v19, 40
  %v25 = vadd.s32 %v19, 48
  %v26 = vadd.s32 %v19, 56
  %v27 = vadd.s32 %v19, 64
  %v28 = vadd.s32 %v19, 72
  %v29 = vadd.s32 %v19, 80
  %v30 = vadd.s32 %v19, 88
  %v31 = vadd.s32 %v19, 96
  %v32 = vadd.s32 %v19, 104
  %v33 = vadd.s32 %v19, 112
  %v34 = vadd.s32 %v19, 120
  %v35 = vadd.s32 %v19, 128
  %v36 = vadd.s32 %v19, 136
  %v37 = vadd.s32 %v19, 144
  %v38 = vadd.s32 %v19, 152
  %v39 = vadd.s32 %v19, 160
  %v40 = vadd.s32 %v19, 168
  %v41 = vadd.s32 %v19, 176
  %v42 = vadd.s32 %v19, 184
  %v43 = vadd.s32 %v19, 192
  %v44 = vadd.s32 %v19, 200
  %v45 = vadd.s32 %v19, 208
  %v46 = vadd.s32 %v19, 216
  %v47 = vadd.s32 %v19, 224
  %v48 = vadd.s32 %v19, 232
  %v49 = vadd.s32 %v19, 240
  %v50 = vadd.s32 %v19, 248
  %vm51 = vcmp.lt.s32.totalorder %v19, 18
  %vm52 = vcmp.lt.s32.totalorder %v20, 18
  %vm53 = vcmp.lt.s32.totalorder %v21, 18
  %vm54 = vcmp.lt.s32.totalorder %v22, 18
  %vm55 = vcmp.lt.s32.totalorder %v23, 18
  %vm56 = vcmp.lt.s32.totalorder %v24, 18
  %vm57 = vcmp.lt.s32.totalorder %v25, 18
  %vm58 = vcmp.lt.s32.totalorder %v26, 18
  %vm59 = vcmp.lt.s32.totalorder %v27, 18
  %vm60 = vcmp.lt.s32.totalorder %v28, 18
  %vm61 = vcmp.lt.s32.totalorder %v29, 18
  %vm62 = vcmp.lt.s32.totalorder %v30, 18
  %vm63 = vcmp.lt.s32.totalorder %v31, 18
  %vm64 = vcmp.lt.s32.totalorder %v32, 18
  %vm65 = vcmp.lt.s32.totalorder %v33, 18
  %vm66 = vcmp.lt.s32.totalorder %v34, 18
  %vm67 = vcmp.lt.s32.totalorder %v35, 18
  %vm68 = vcmp.lt.s32.totalorder %v36, 18
  %vm69 = vcmp.lt.s32.totalorder %v37, 18
  %vm70 = vcmp.lt.s32.totalorder %v38, 18
  %vm71 = vcmp.lt.s32.totalorder %v39, 18
  %vm72 = vcmp.lt.s32.totalorder %v40, 18
  %vm73 = vcmp.lt.s32.totalorder %v41, 18
  %vm74 = vcmp.lt.s32.totalorder %v42, 18
  %vm75 = vcmp.lt.s32.totalorder %v43, 18
  %vm76 = vcmp.lt.s32.totalorder %v44, 18
  %vm77 = vcmp.lt.s32.totalorder %v45, 18
  %vm78 = vcmp.lt.s32.totalorder %v46, 18
  %vm79 = vcmp.lt.s32.totalorder %v47, 18
  %vm80 = vcmp.lt.s32.totalorder %v48, 18
  %vm81 = vcmp.lt.s32.totalorder %v49, 18
  %vm82 = vcmp.lt.s32.totalorder %v50, 18
  %v83 = vsel %vm51, 1, 0
  %v84 = vsel %vm52, 1, 0
  %v85 = vsel %vm53, 1, 0
  %v86 = vsel %vm54, 1, 0
  %v87 = vsel %vm55, 1, 0
  %v88 = vsel %vm56, 1, 0
  %v89 = vsel %vm57, 1, 0
  %v90 = vsel %vm58, 1, 0
  %v91 = vsel %vm59, 1, 0
  %v92 = vsel %vm60, 1, 0
  %v93 = vsel %vm61, 1, 0
  %v94 = vsel %vm62, 1, 0
  %v95 = vsel %vm63, 1, 0
  %v96 = vsel %vm64, 1, 0
  %v97 = vsel %vm65, 1, 0
  %v98 = vsel %vm66, 1, 0
  %v99 = vsel %vm67, 1, 0
  %v100 = vsel %vm68, 1, 0
  %v101 = vsel %vm69, 1, 0
  %v102 = vsel %vm70, 1, 0
  %v103 = vsel %vm71, 1, 0
  %v104 = vsel %vm72, 1, 0
  %v105 = vsel %vm73, 1, 0
  %v106 = vsel %vm74, 1, 0
  %v107 = vsel %vm75, 1, 0
  %v108 = vsel %vm76, 1, 0
  %v109 = vsel %vm77, 1, 0
  %v110 = vsel %vm78, 1, 0
  %v111 = vsel %vm79, 1, 0
  %v112 = vsel %vm80, 1, 0
  %v113 = vsel %vm81, 1, 0
  %v114 = vsel %vm82, 1, 0
  %v115 = vcvt.s32.f32 %v83
  %v116 = vcvt.s32.f32 %v84
  %v117 = vcvt.s32.f32 %v85
  %v118 = vcvt.s32.f32 %v86
  %v119 = vcvt.s32.f32 %v87
  %v120 = vcvt.s32.f32 %v88
  %v121 = vcvt.s32.f32 %v89
  %v122 = vcvt.s32.f32 %v90
  %v123 = vcvt.s32.f32 %v91
  %v124 = vcvt.s32.f32 %v92
  %v125 = vcvt.s32.f32 %v93
  %v126 = vcvt.s32.f32 %v94
  %v127 = vcvt.s32.f32 %v95
  %v128 = vcvt.s32.f32 %v96
  %v129 = vcvt.s32.f32 %v97
  %v130 = vcvt.s32.f32 %v98
  %v131 = vcvt.s32.f32 %v99
  %v132 = vcvt.s32.f32 %v100
  %v133 = vcvt.s32.f32 %v101
  %v134 = vcvt.s32.f32 %v102
  %v135 = vcvt.s32.f32 %v103
  %v136 = vcvt.s32.f32 %v104
  %v137 = vcvt.s32.f32 %v105
  %v138 = vcvt.s32.f32 %v106
  %v139 = vcvt.s32.f32 %v107
  %v140 = vcvt.s32.f32 %v108
  %v141 = vcvt.s32.f32 %v109
  %v142 = vcvt.s32.f32 %v110
  %v143 = vcvt.s32.f32 %v111
  %v144 = vcvt.s32.f32 %v112
  %v145 = vcvt.s32.f32 %v113
  %v146 = vcvt.s32.f32 %v114
  %v147 = vld [vmem:[%s0] sm:$0xff]
  %v148 = vld [vmem:[%s0 + $0x8] sm:$0xff]
  %v149 = vld [vmem:[%s0 + $0x10] sm:$0xff]
  %v150 = vld [vmem:[%s0 + $0x18] sm:$0xff]
  %v151 = vld [vmem:[%s0 + $0x20] sm:$0xff]
  %v152 = vld [vmem:[%s0 + $0x28] sm:$0xff]
  %v153 = vld [vmem:[%s0 + $0x30] sm:$0xff]
  %v154 = vld [vmem:[%s0 + $0x38] sm:$0xff]
  %v155 = vld [vmem:[%s0 + $0x40] sm:$0xff]
  %v156 = vld [vmem:[%s0 + $0x48] sm:$0xff]
  %v157 = vld [vmem:[%s0 + $0x50] sm:$0xff]
  %v158 = vld [vmem:[%s0 + $0x58] sm:$0xff]
  %v159 = vld [vmem:[%s0 + $0x60] sm:$0xff]
  %v160 = vld [vmem:[%s0 + $0x68] sm:$0xff]
  %v161 = vld [vmem:[%s0 + $0x70] sm:$0xff]
  %v162 = vld [vmem:[%s0 + $0x78] sm:$0xff]
  %v163 = vld [vmem:[%s0 + $0x80] sm:$0xff]
  %v164 = vld [vmem:[%s0 + $0x88] sm:$0xff]
  %v165 = vld [vmem:[%s0 + $0x90] sm:$0xff]
  %v166 = vld [vmem:[%s0 + $0x98] sm:$0xff]
  %v167 = vld [vmem:[%s0 + $0xa0] sm:$0xff]
  %v168 = vld [vmem:[%s0 + $0xa8] sm:$0xff]
  %v169 = vld [vmem:[%s0 + $0xb0] sm:$0xff]
  %v170 = vld [vmem:[%s0 + $0xb8] sm:$0xff]
  %v171 = vld [vmem:[%s0 + $0xc0] sm:$0xff]
  %v172 = vld [vmem:[%s0 + $0xc8] sm:$0xff]
  %v173 = vld [vmem:[%s0 + $0xd0] sm:$0xff]
  %v174 = vld [vmem:[%s0 + $0xd8] sm:$0xff]
  %v175 = vld [vmem:[%s0 + $0xe0] sm:$0xff]
  %v176 = vld [vmem:[%s0 + $0xe8] sm:$0xff]
  %v177 = vld [vmem:[%s0 + $0xf0] sm:$0xff]
  %v178 = vld [vmem:[%s0 + $0xf8] sm:$0xff]
  %v179 = vld [vmem:[%s1] sm:$0xff]
  %v180 = vld [vmem:[%s1 + $0x8] sm:$0xff]
  %v181 = vld [vmem:[%s1 + $0x10] sm:$0xff]
  %v182 = vld [vmem:[%s1 + $0x18] sm:$0xff]
  %v183 = vld [vmem:[%s1 + $0x20] sm:$0xff]
  %v184 = vld [vmem:[%s1 + $0x28] sm:$0xff]
  %v185 = vld [vmem:[%s1 + $0x30] sm:$0xff]
  %v186 = vld [vmem:[%s1 + $0x38] sm:$0xff]
  %v187 = vld [vmem:[%s1 + $0x40] sm:$0xff]
  %v188 = vld [vmem:[%s1 + $0x48] sm:$0xff]
  %v189 = vld [vmem:[%s1 + $0x50] sm:$0xff]
  %v190 = vld [vmem:[%s1 + $0x58] sm:$0xff]
  %v191 = vld [vmem:[%s1 + $0x60] sm:$0xff]
  %v192 = vld [vmem:[%s1 + $0x68] sm:$0xff]
  %v193 = vld [vmem:[%s1 + $0x70] sm:$0xff]
  %v194 = vld [vmem:[%s1 + $0x78] sm:$0xff]
  %v195 = vld [vmem:[%s1 + $0x80] sm:$0xff]
  %v196 = vld [vmem:[%s1 + $0x88] sm:$0xff]
  %v197 = vld [vmem:[%s1 + $0x90] sm:$0xff]
  %v198 = vld [vmem:[%s1 + $0x98] sm:$0xff]
  %v199 = vld [vmem:[%s1 + $0xa0] sm:$0xff]
  %v200 = vld [vmem:[%s1 + $0xa8] sm:$0xff]
  %v201 = vld [vmem:[%s1 + $0xb0] sm:$0xff]
  %v202 = vld [vmem:[%s1 + $0xb8] sm:$0xff]
  %v203 = vld [vmem:[%s1 + $0xc0] sm:$0xff]
  %v204 = vld [vmem:[%s1 + $0xc8] sm:$0xff]
  %v205 = vld [vmem:[%s1 + $0xd0] sm:$0xff]
  %v206 = vld [vmem:[%s1 + $0xd8] sm:$0xff]
  %v207 = vld [vmem:[%s1 + $0xe0] sm:$0xff]
  %v208 = vld [vmem:[%s1 + $0xe8] sm:$0xff]
  %v209 = vld [vmem:[%s1 + $0xf0] sm:$0xff]
  %v210 = vld [vmem:[%s1 + $0xf8] sm:$0xff]
  %v211 = vld [vmem:[%s2] sm:$0xf]
  %v212 = vld [vmem:[%s2 + $0x4] sm:$0xf]
  %v213 = vld [vmem:[%s2 + $0x8] sm:$0xf]
  %v214 = vld [vmem:[%s2 + $0xc] sm:$0xf]
  %v215 = vld [vmem:[%s2 + $0x10] sm:$0xf]
  %v216 = vld [vmem:[%s2 + $0x14] sm:$0xf]
  %v217 = vld [vmem:[%s2 + $0x18] sm:$0xf]
  %v218 = vld [vmem:[%s2 + $0x1c] sm:$0xf]
  %v219 = vld [vmem:[%s2 + $0x20] sm:$0xf]
  %v220 = vld [vmem:[%s2 + $0x24] sm:$0xf]
  %v221 = vld [vmem:[%s2 + $0x28] sm:$0xf]
  %v222 = vld [vmem:[%s2 + $0x2c] sm:$0xf]
  %v223 = vld [vmem:[%s2 + $0x30] sm:$0xf]
  %v224 = vld [vmem:[%s2 + $0x34] sm:$0xf]
  %v225 = vld [vmem:[%s2 + $0x38] sm:$0xf]
  %v226 = vld [vmem:[%s2 + $0x3c] sm:$0xf]
  %v227 = vld [vmem:[%s3] sm:$0xff]
  %v228 = vpack.c.bf16 %v180, %v179
  %v229 = vpack.c.bf16 %v182, %v181
  %v230 = vpack.c.bf16 %v184, %v183
  %v231 = vpack.c.bf16 %v186, %v185
  %v232 = vpack.c.bf16 %v188, %v187
  %v233 = vpack.c.bf16 %v190, %v189
  %v234 = vpack.c.bf16 %v192, %v191
  %v235 = vpack.c.bf16 %v194, %v193
  %v236 = vpack.c.bf16 %v196, %v195
  %v237 = vpack.c.bf16 %v198, %v197
  %v238 = vpack.c.bf16 %v200, %v199
  %v239 = vpack.c.bf16 %v202, %v201
  %v240 = vpack.c.bf16 %v204, %v203
  %v241 = vpack.c.bf16 %v206, %v205
  %v242 = vpack.c.bf16 %v208, %v207
  %v243 = vpack.c.bf16 %v210, %v209
  %v260 = vunpack.c.l.b16 %v211
  %v261 = vunpack.c.l.b16 %v212
  %v262 = vunpack.c.l.b16 %v213
  %v263 = vunpack.c.l.b16 %v214
  %v264 = vunpack.c.l.b16 %v215
  %v265 = vunpack.c.l.b16 %v216
  %v266 = vunpack.c.l.b16 %v217
  %v267 = vunpack.c.l.b16 %v218
  %v268 = vunpack.c.l.b16 %v219
  %v269 = vunpack.c.l.b16 %v220
  %v270 = vunpack.c.l.b16 %v221
  %v271 = vunpack.c.l.b16 %v222
  %v272 = vunpack.c.l.b16 %v223
  %v273 = vunpack.c.l.b16 %v224
  %v274 = vunpack.c.l.b16 %v225
  %v275 = vunpack.c.l.b16 %v226
  %v276 = vpack.c.b16 %v261, %v260
  %v277 = vpack.c.b16 %v263, %v262
  %v278 = vpack.c.b16 %v265, %v264
  %v279 = vpack.c.b16 %v267, %v266
  %v280 = vpack.c.b16 %v269, %v268
  %v281 = vpack.c.b16 %v271, %v270
  %v282 = vpack.c.b16 %v273, %v272
  %v283 = vpack.c.b16 %v275, %v274
  %292 = vmatprep.subr.bf16.mxu0 0
  %293 = vmatpush1.bf16.msra.mxu0 %v283
  %294 = vmatprep.subr.bf16.mxu0 0
  %295 = vmatpush1.bf16.msra.mxu0 %v282
  %296 = vmatprep.subr.bf16.mxu0 0
  %297 = vmatpush1.bf16.msra.mxu0 %v281
  %298 = vmatprep.subr.bf16.mxu0 0
  %299 = vmatpush1.bf16.msra.mxu0 %v280
  %300 = vmatprep.subr.bf16.mxu0 0
  %301 = vmatpush1.bf16.msra.mxu0 %v279
  %302 = vmatprep.subr.bf16.mxu0 0
  %303 = vmatpush1.bf16.msra.mxu0 %v278
  %304 = vmatprep.subr.bf16.mxu0 0
  %305 = vmatpush1.bf16.msra.mxu0 %v277
  %306 = vmatprep.subr.bf16.mxu0 0
  %307 = vmatpush1.bf16.msra.mxu0 %v276
  %308 = vmatprep.subr.bf16.mxu0 0
  %309 = vmatpush2.bf16.msra.mxu0 0
  %310 = vmatprep.subr.bf16.mxu0 0
  %311 = vmatpush2.bf16.msra.mxu0 0
  %312 = vmatprep.subr.bf16.mxu0 0
  %313 = vmatpush2.bf16.msra.mxu0 0
  %314 = vmatprep.subr.bf16.mxu0 0
  %315 = vmatpush2.bf16.msra.mxu0 0
  %316 = vmatprep.subr.bf16.mxu0 0
  %317 = vmatpush2.bf16.msra.mxu0 0
  %318 = vmatprep.subr.bf16.mxu0 0
  %319 = vmatpush2.bf16.msra.mxu0 0
  %320 = vmatprep.subr.bf16.mxu0 0
  %321 = vmatpush2.bf16.msra.mxu0 0
  %322 = vmatprep.subr.bf16.mxu0 0
  %323 = vmatpush2.bf16.msra.mxu0 0
  %324 = vmatprep.mubr.bf16.mxu0 0
  %325 = vmatmul.mubr.bf16.gmra.mxu0 %v228
  %v326 = vpop.f32.mrf.mxu0
  %v327 = vadd.f32 0.0, %v326
  %v328 = vpop.f32.mrf.mxu0
  %v329 = vpop.f32.mrf.mxu0
  %v330 = vadd.f32 0.0, %v329
  %v331 = vpop.f32.mrf.mxu0
  %332 = vmatprep.mubr.bf16.mxu0 0
  %333 = vmatmul.mubr.bf16.gmra.mxu0 %v229
  %v334 = vpop.f32.mrf.mxu0
  %v335 = vadd.f32 0.0, %v334
  %v336 = vpop.f32.mrf.mxu0
  %v337 = vpop.f32.mrf.mxu0
  %v338 = vadd.f32 0.0, %v337
  %v339 = vpop.f32.mrf.mxu0
  %340 = vmatprep.mubr.bf16.mxu0 0
  %341 = vmatmul.mubr.bf16.gmra.mxu0 %v230
  %v342 = vpop.f32.mrf.mxu0
  %v343 = vadd.f32 0.0, %v342
  %v344 = vpop.f32.mrf.mxu0
  %v345 = vpop.f32.mrf.mxu0
  %v346 = vadd.f32 0.0, %v345
  %v347 = vpop.f32.mrf.mxu0
  %348 = vmatprep.mubr.bf16.mxu0 0
  %349 = vmatmul.mubr.bf16.gmra.mxu0 %v231
  %v350 = vpop.f32.mrf.mxu0
  %v351 = vadd.f32 0.0, %v350
  %v352 = vpop.f32.mrf.mxu0
  %v353 = vpop.f32.mrf.mxu0
  %v354 = vadd.f32 0.0, %v353
  %v355 = vpop.f32.mrf.mxu0
  %356 = vmatprep.mubr.bf16.mxu0 0
  %357 = vmatmul.mubr.bf16.gmra.mxu0 %v232
  %v358 = vpop.f32.mrf.mxu0
  %v359 = vadd.f32 0.0, %v358
  %v360 = vpop.f32.mrf.mxu0
  %v361 = vpop.f32.mrf.mxu0
  %v362 = vadd.f32 0.0, %v361
  %v363 = vpop.f32.mrf.mxu0
  %364 = vmatprep.mubr.bf16.mxu0 0
  %365 = vmatmul.mubr.bf16.gmra.mxu0 %v233
  %v366 = vpop.f32.mrf.mxu0
  %v367 = vadd.f32 0.0, %v366
  %v368 = vpop.f32.mrf.mxu0
  %v369 = vpop.f32.mrf.mxu0
  %v370 = vadd.f32 0.0, %v369
  %v371 = vpop.f32.mrf.mxu0
  %372 = vmatprep.mubr.bf16.mxu0 0
  %373 = vmatmul.mubr.bf16.gmra.mxu0 %v234
  %v374 = vpop.f32.mrf.mxu0
  %v375 = vadd.f32 0.0, %v374
  %v376 = vpop.f32.mrf.mxu0
  %v377 = vpop.f32.mrf.mxu0
  %v378 = vadd.f32 0.0, %v377
  %v379 = vpop.f32.mrf.mxu0
  %380 = vmatprep.mubr.bf16.mxu0 0
  %381 = vmatmul.mubr.bf16.gmra.mxu0 %v235
  %v382 = vpop.f32.mrf.mxu0
  %v383 = vadd.f32 0.0, %v382
  %v384 = vpop.f32.mrf.mxu0
  %v385 = vpop.f32.mrf.mxu0
  %v386 = vadd.f32 0.0, %v385
  %v387 = vpop.f32.mrf.mxu0
  %388 = vmatprep.mubr.bf16.mxu0 0
  %389 = vmatmul.mubr.bf16.gmra.mxu0 %v236
  %v390 = vpop.f32.mrf.mxu0
  %v391 = vadd.f32 0.0, %v390
  %v392 = vpop.f32.mrf.mxu0
  %v393 = vpop.f32.mrf.mxu0
  %v394 = vadd.f32 0.0, %v393
  %v395 = vpop.f32.mrf.mxu0
  %396 = vmatprep.mubr.bf16.mxu0 0
  %397 = vmatmul.mubr.bf16.gmra.mxu0 %v237
  %v398 = vpop.f32.mrf.mxu0
  %v399 = vadd.f32 0.0, %v398
  %v400 = vpop.f32.mrf.mxu0
  %v401 = vpop.f32.mrf.mxu0
  %v402 = vadd.f32 0.0, %v401
  %v403 = vpop.f32.mrf.mxu0
  %404 = vmatprep.mubr.bf16.mxu0 0
  %405 = vmatmul.mubr.bf16.gmra.mxu0 %v238
  %v406 = vpop.f32.mrf.mxu0
  %v407 = vadd.f32 0.0, %v406
  %v408 = vpop.f32.mrf.mxu0
  %v409 = vpop.f32.mrf.mxu0
  %v410 = vadd.f32 0.0, %v409
  %v411 = vpop.f32.mrf.mxu0
  %412 = vmatprep.mubr.bf16.mxu0 0
  %413 = vmatmul.mubr.bf16.gmra.mxu0 %v239
  %v414 = vpop.f32.mrf.mxu0
  %v415 = vadd.f32 0.0, %v414
  %v416 = vpop.f32.mrf.mxu0
  %v417 = vpop.f32.mrf.mxu0
  %v418 = vadd.f32 0.0, %v417
  %v419 = vpop.f32.mrf.mxu0
  %420 = vmatprep.mubr.bf16.mxu0 0
  %421 = vmatmul.mubr.bf16.gmra.mxu0 %v240
  %v422 = vpop.f32.mrf.mxu0
  %v423 = vadd.f32 0.0, %v422
  %v424 = vpop.f32.mrf.mxu0
  %v425 = vpop.f32.mrf.mxu0
  %v426 = vadd.f32 0.0, %v425
  %v427 = vpop.f32.mrf.mxu0
  %428 = vmatprep.mubr.bf16.mxu0 0
  %429 = vmatmul.mubr.bf16.gmra.mxu0 %v241
  %v430 = vpop.f32.mrf.mxu0
  %v431 = vadd.f32 0.0, %v430
  %v432 = vpop.f32.mrf.mxu0
  %v433 = vpop.f32.mrf.mxu0
  %v434 = vadd.f32 0.0, %v433
  %v435 = vpop.f32.mrf.mxu0
  %436 = vmatprep.mubr.bf16.mxu0 0
  %437 = vmatmul.mubr.bf16.gmra.mxu0 %v242
  %v438 = vpop.f32.mrf.mxu0
  %v439 = vadd.f32 0.0, %v438
  %v440 = vpop.f32.mrf.mxu0
  %v441 = vpop.f32.mrf.mxu0
  %v442 = vadd.f32 0.0, %v441
  %v443 = vpop.f32.mrf.mxu0
  %444 = vmatprep.mubr.bf16.mxu0 0
  %445 = vmatmul.mubr.bf16.gmra.mxu0 %v243
  %v446 = vpop.f32.mrf.mxu0
  %v447 = vadd.f32 0.0, %v446
  %v448 = vpop.f32.mrf.mxu0
  %v449 = vpop.f32.mrf.mxu0
  %v450 = vadd.f32 0.0, %v449
  %v451 = vpop.f32.mrf.mxu0
  %452 = vdwg.mxu0
  %v453 = vpack.c.bf16 %v330, %v327
  %v454 = vpack.c.bf16 %v338, %v335
  %v455 = vpack.c.bf16 %v346, %v343
  %v456 = vpack.c.bf16 %v354, %v351
  %v457 = vpack.c.bf16 %v362, %v359
  %v458 = vpack.c.bf16 %v370, %v367
  %v459 = vpack.c.bf16 %v378, %v375
  %v460 = vpack.c.bf16 %v386, %v383
  %v461 = vpack.c.bf16 %v394, %v391
  %v462 = vpack.c.bf16 %v402, %v399
  %v463 = vpack.c.bf16 %v410, %v407
  %v464 = vpack.c.bf16 %v418, %v415
  %v465 = vpack.c.bf16 %v426, %v423
  %v466 = vpack.c.bf16 %v434, %v431
  %v467 = vpack.c.bf16 %v442, %v439
  %v468 = vpack.c.bf16 %v450, %v447
  %v469 = vlaneseq
  %v470 = vshrl.u32 %v469, 7
  %v471 = vsub.s32 0, %v470
  %v472 = vrot.slane %v227, %v471
  %v505 = vunpack.c.l.b16 %v147
  %v506 = vunpack.c.h.b16 %v147
  %v507 = vunpack.c.l.b16 %v148
  %v508 = vunpack.c.h.b16 %v148
  %v509 = vunpack.c.l.b16 %v149
  %v510 = vunpack.c.h.b16 %v149
  %v511 = vunpack.c.l.b16 %v150
  %v512 = vunpack.c.h.b16 %v150
  %v513 = vunpack.c.l.b16 %v151
  %v514 = vunpack.c.h.b16 %v151
  %v515 = vunpack.c.l.b16 %v152
  %v516 = vunpack.c.h.b16 %v152
  %v517 = vunpack.c.l.b16 %v153
  %v518 = vunpack.c.h.b16 %v153
  %v519 = vunpack.c.l.b16 %v154
  %v520 = vunpack.c.h.b16 %v154
  %v521 = vunpack.c.l.b16 %v155
  %v522 = vunpack.c.h.b16 %v155
  %v523 = vunpack.c.l.b16 %v156
  %v524 = vunpack.c.h.b16 %v156
  %v525 = vunpack.c.l.b16 %v157
  %v526 = vunpack.c.h.b16 %v157
  %v527 = vunpack.c.l.b16 %v158
  %v528 = vunpack.c.h.b16 %v158
  %v529 = vunpack.c.l.b16 %v159
  %v530 = vunpack.c.h.b16 %v159
  %v531 = vunpack.c.l.b16 %v160
  %v532 = vunpack.c.h.b16 %v160
  %v533 = vunpack.c.l.b16 %v161
  %v534 = vunpack.c.h.b16 %v161
  %v535 = vunpack.c.l.b16 %v162
  %v536 = vunpack.c.h.b16 %v162
  %v537 = vunpack.c.l.b16 %v163
  %v538 = vunpack.c.h.b16 %v163
  %v539 = vunpack.c.l.b16 %v164
  %v540 = vunpack.c.h.b16 %v164
  %v541 = vunpack.c.l.b16 %v165
  %v542 = vunpack.c.h.b16 %v165
  %v543 = vunpack.c.l.b16 %v166
  %v544 = vunpack.c.h.b16 %v166
  %v545 = vunpack.c.l.b16 %v167
  %v546 = vunpack.c.h.b16 %v167
  %v547 = vunpack.c.l.b16 %v168
  %v548 = vunpack.c.h.b16 %v168
  %v549 = vunpack.c.l.b16 %v169
  %v550 = vunpack.c.h.b16 %v169
  %v551 = vunpack.c.l.b16 %v170
  %v552 = vunpack.c.h.b16 %v170
  %v553 = vunpack.c.l.b16 %v171
  %v554 = vunpack.c.h.b16 %v171
  %v555 = vunpack.c.l.b16 %v172
  %v556 = vunpack.c.h.b16 %v172
  %v557 = vunpack.c.l.b16 %v173
  %v558 = vunpack.c.h.b16 %v173
  %v559 = vunpack.c.l.b16 %v174
  %v560 = vunpack.c.h.b16 %v174
  %v561 = vunpack.c.l.b16 %v175
  %v562 = vunpack.c.h.b16 %v175
  %v563 = vunpack.c.l.b16 %v176
  %v564 = vunpack.c.h.b16 %v176
  %v565 = vunpack.c.l.b16 %v177
  %v566 = vunpack.c.h.b16 %v177
  %v567 = vunpack.c.l.b16 %v178
  %v568 = vunpack.c.h.b16 %v178
  %v569 = vpack.c.b16 %v507, %v505
  %v570 = vpack.c.b16 %v508, %v506
  %v571 = vpack.c.b16 %v511, %v509
  %v572 = vpack.c.b16 %v512, %v510
  %v573 = vpack.c.b16 %v515, %v513
  %v574 = vpack.c.b16 %v516, %v514
  %v575 = vpack.c.b16 %v519, %v517
  %v576 = vpack.c.b16 %v520, %v518
  %v577 = vpack.c.b16 %v523, %v521
  %v578 = vpack.c.b16 %v524, %v522
  %v579 = vpack.c.b16 %v527, %v525
  %v580 = vpack.c.b16 %v528, %v526
  %v581 = vpack.c.b16 %v531, %v529
  %v582 = vpack.c.b16 %v532, %v530
  %v583 = vpack.c.b16 %v535, %v533
  %v584 = vpack.c.b16 %v536, %v534
  %v585 = vpack.c.b16 %v539, %v537
  %v586 = vpack.c.b16 %v540, %v538
  %v587 = vpack.c.b16 %v543, %v541
  %v588 = vpack.c.b16 %v544, %v542
  %v589 = vpack.c.b16 %v547, %v545
  %v590 = vpack.c.b16 %v548, %v546
  %v591 = vpack.c.b16 %v551, %v549
  %v592 = vpack.c.b16 %v552, %v550
  %v593 = vpack.c.b16 %v555, %v553
  %v594 = vpack.c.b16 %v556, %v554
  %v595 = vpack.c.b16 %v559, %v557
  %v596 = vpack.c.b16 %v560, %v558
  %v597 = vpack.c.b16 %v563, %v561
  %v598 = vpack.c.b16 %v564, %v562
  %v599 = vpack.c.b16 %v567, %v565
  %v600 = vpack.c.b16 %v568, %v566
  %633 = vmatprep.subr.bf16.mxu0 0
  %634 = vmatpush1.bf16.msra.mxu0 %v460
  %635 = vmatprep.subr.bf16.mxu0 0
  %636 = vmatpush1.bf16.msra.mxu0 %v459
  %637 = vmatprep.subr.bf16.mxu0 0
  %638 = vmatpush1.bf16.msra.mxu0 %v458
  %639 = vmatprep.subr.bf16.mxu0 0
  %640 = vmatpush1.bf16.msra.mxu0 %v457
  %641 = vmatprep.subr.bf16.mxu0 0
  %642 = vmatpush1.bf16.msra.mxu0 %v456
  %643 = vmatprep.subr.bf16.mxu0 0
  %644 = vmatpush1.bf16.msra.mxu0 %v455
  %645 = vmatprep.subr.bf16.mxu0 0
  %646 = vmatpush1.bf16.msra.mxu0 %v454
  %647 = vmatprep.subr.bf16.mxu0 0
  %648 = vmatpush1.bf16.msra.mxu0 %v453
  %649 = vmatprep.subr.bf16.mxu0 0
  %650 = vmatpush2.bf16.msra.mxu0 %v468
  %651 = vmatprep.subr.bf16.mxu0 0
  %652 = vmatpush2.bf16.msra.mxu0 %v467
  %653 = vmatprep.subr.bf16.mxu0 0
  %654 = vmatpush2.bf16.msra.mxu0 %v466
  %655 = vmatprep.subr.bf16.mxu0 0
  %656 = vmatpush2.bf16.msra.mxu0 %v465
  %657 = vmatprep.subr.bf16.mxu0 0
  %658 = vmatpush2.bf16.msra.mxu0 %v464
  %659 = vmatprep.subr.bf16.mxu0 0
  %660 = vmatpush2.bf16.msra.mxu0 %v463
  %661 = vmatprep.subr.bf16.mxu0 0
  %662 = vmatpush2.bf16.msra.mxu0 %v462
  %663 = vmatprep.subr.bf16.mxu0 0
  %664 = vmatpush2.bf16.msra.mxu0 %v461
  %665 = vmatprep.mubr.bf16.mxu0 %v570
  %666 = vmatmul.mubr.bf16.gmra.mxu0 %v569
  %v667 = vpop.f32.mrf.mxu0
  %v668 = vadd.f32 %v472, %v667
  %v669 = vpop.f32.mrf.mxu0
  %v670 = vpop.f32.mrf.mxu0
  %v671 = vadd.f32 %v472, %v670
  %v672 = vpop.f32.mrf.mxu0
  %673 = vmatprep.mubr.bf16.mxu0 %v572
  %674 = vmatmul.mubr.bf16.gmra.mxu0 %v571
  %v675 = vpop.f32.mrf.mxu0
  %v676 = vadd.f32 %v472, %v675
  %v677 = vpop.f32.mrf.mxu0
  %v678 = vpop.f32.mrf.mxu0
  %v679 = vadd.f32 %v472, %v678
  %v680 = vpop.f32.mrf.mxu0
  %681 = vmatprep.mubr.bf16.mxu0 %v574
  %682 = vmatmul.mubr.bf16.gmra.mxu0 %v573
  %v683 = vpop.f32.mrf.mxu0
  %v684 = vadd.f32 %v472, %v683
  %v685 = vpop.f32.mrf.mxu0
  %v686 = vpop.f32.mrf.mxu0
  %v687 = vadd.f32 %v472, %v686
  %v688 = vpop.f32.mrf.mxu0
  %689 = vmatprep.mubr.bf16.mxu0 %v576
  %690 = vmatmul.mubr.bf16.gmra.mxu0 %v575
  %v691 = vpop.f32.mrf.mxu0
  %v692 = vadd.f32 %v472, %v691
  %v693 = vpop.f32.mrf.mxu0
  %v694 = vpop.f32.mrf.mxu0
  %v695 = vadd.f32 %v472, %v694
  %v696 = vpop.f32.mrf.mxu0
  %697 = vmatprep.mubr.bf16.mxu0 %v578
  %698 = vmatmul.mubr.bf16.gmra.mxu0 %v577
  %v699 = vpop.f32.mrf.mxu0
  %v700 = vadd.f32 %v472, %v699
  %v701 = vpop.f32.mrf.mxu0
  %v702 = vpop.f32.mrf.mxu0
  %v703 = vadd.f32 %v472, %v702
  %v704 = vpop.f32.mrf.mxu0
  %705 = vmatprep.mubr.bf16.mxu0 %v580
  %706 = vmatmul.mubr.bf16.gmra.mxu0 %v579
  %v707 = vpop.f32.mrf.mxu0
  %v708 = vadd.f32 %v472, %v707
  %v709 = vpop.f32.mrf.mxu0
  %v710 = vpop.f32.mrf.mxu0
  %v711 = vadd.f32 %v472, %v710
  %v712 = vpop.f32.mrf.mxu0
  %713 = vmatprep.mubr.bf16.mxu0 %v582
  %714 = vmatmul.mubr.bf16.gmra.mxu0 %v581
  %v715 = vpop.f32.mrf.mxu0
  %v716 = vadd.f32 %v472, %v715
  %v717 = vpop.f32.mrf.mxu0
  %v718 = vpop.f32.mrf.mxu0
  %v719 = vadd.f32 %v472, %v718
  %v720 = vpop.f32.mrf.mxu0
  %721 = vmatprep.mubr.bf16.mxu0 %v584
  %722 = vmatmul.mubr.bf16.gmra.mxu0 %v583
  %v723 = vpop.f32.mrf.mxu0
  %v724 = vadd.f32 %v472, %v723
  %v725 = vpop.f32.mrf.mxu0
  %v726 = vpop.f32.mrf.mxu0
  %v727 = vadd.f32 %v472, %v726
  %v728 = vpop.f32.mrf.mxu0
  %729 = vmatprep.mubr.bf16.mxu0 %v586
  %730 = vmatmul.mubr.bf16.gmra.mxu0 %v585
  %v731 = vpop.f32.mrf.mxu0
  %v732 = vadd.f32 %v472, %v731
  %v733 = vpop.f32.mrf.mxu0
  %v734 = vpop.f32.mrf.mxu0
  %v735 = vadd.f32 %v472, %v734
  %v736 = vpop.f32.mrf.mxu0
  %737 = vmatprep.mubr.bf16.mxu0 %v588
  %738 = vmatmul.mubr.bf16.gmra.mxu0 %v587
  %v739 = vpop.f32.mrf.mxu0
  %v740 = vadd.f32 %v472, %v739
  %v741 = vpop.f32.mrf.mxu0
  %v742 = vpop.f32.mrf.mxu0
  %v743 = vadd.f32 %v472, %v742
  %v744 = vpop.f32.mrf.mxu0
  %745 = vmatprep.mubr.bf16.mxu0 %v590
  %746 = vmatmul.mubr.bf16.gmra.mxu0 %v589
  %v747 = vpop.f32.mrf.mxu0
  %v748 = vadd.f32 %v472, %v747
  %v749 = vpop.f32.mrf.mxu0
  %v750 = vpop.f32.mrf.mxu0
  %v751 = vadd.f32 %v472, %v750
  %v752 = vpop.f32.mrf.mxu0
  %753 = vmatprep.mubr.bf16.mxu0 %v592
  %754 = vmatmul.mubr.bf16.gmra.mxu0 %v591
  %v755 = vpop.f32.mrf.mxu0
  %v756 = vadd.f32 %v472, %v755
  %v757 = vpop.f32.mrf.mxu0
  %v758 = vpop.f32.mrf.mxu0
  %v759 = vadd.f32 %v472, %v758
  %v760 = vpop.f32.mrf.mxu0
  %761 = vmatprep.mubr.bf16.mxu0 %v594
  %762 = vmatmul.mubr.bf16.gmra.mxu0 %v593
  %v763 = vpop.f32.mrf.mxu0
  %v764 = vadd.f32 %v472, %v763
  %v765 = vpop.f32.mrf.mxu0
  %v766 = vpop.f32.mrf.mxu0
  %v767 = vadd.f32 %v472, %v766
  %v768 = vpop.f32.mrf.mxu0
  %769 = vmatprep.mubr.bf16.mxu0 %v596
  %770 = vmatmul.mubr.bf16.gmra.mxu0 %v595
  %v771 = vpop.f32.mrf.mxu0
  %v772 = vadd.f32 %v472, %v771
  %v773 = vpop.f32.mrf.mxu0
  %v774 = vpop.f32.mrf.mxu0
  %v775 = vadd.f32 %v472, %v774
  %v776 = vpop.f32.mrf.mxu0
  %777 = vmatprep.mubr.bf16.mxu0 %v598
  %778 = vmatmul.mubr.bf16.gmra.mxu0 %v597
  %v779 = vpop.f32.mrf.mxu0
  %v780 = vadd.f32 %v472, %v779
  %v781 = vpop.f32.mrf.mxu0
  %v782 = vpop.f32.mrf.mxu0
  %v783 = vadd.f32 %v472, %v782
  %v784 = vpop.f32.mrf.mxu0
  %785 = vmatprep.mubr.bf16.mxu0 %v600
  %786 = vmatmul.mubr.bf16.gmra.mxu0 %v599
  %v787 = vpop.f32.mrf.mxu0
  %v788 = vadd.f32 %v472, %v787
  %v789 = vpop.f32.mrf.mxu0
  %v790 = vpop.f32.mrf.mxu0
  %v791 = vadd.f32 %v472, %v790
  %v792 = vpop.f32.mrf.mxu0
  %793 = vdwg.mxu0
  %v794 = vmul.f32 %v668, %v115
  %v795 = vmul.f32 %v671, %v116
  %v796 = vmul.f32 %v676, %v117
  %v797 = vmul.f32 %v679, %v118
  %v798 = vmul.f32 %v684, %v119
  %v799 = vmul.f32 %v687, %v120
  %v800 = vmul.f32 %v692, %v121
  %v801 = vmul.f32 %v695, %v122
  %v802 = vmul.f32 %v700, %v123
  %v803 = vmul.f32 %v703, %v124
  %v804 = vmul.f32 %v708, %v125
  %v805 = vmul.f32 %v711, %v126
  %v806 = vmul.f32 %v716, %v127
  %v807 = vmul.f32 %v719, %v128
  %v808 = vmul.f32 %v724, %v129
  %v809 = vmul.f32 %v727, %v130
  %v810 = vmul.f32 %v732, %v131
  %v811 = vmul.f32 %v735, %v132
  %v812 = vmul.f32 %v740, %v133
  %v813 = vmul.f32 %v743, %v134
  %v814 = vmul.f32 %v748, %v135
  %v815 = vmul.f32 %v751, %v136
  %v816 = vmul.f32 %v756, %v137
  %v817 = vmul.f32 %v759, %v138
  %v818 = vmul.f32 %v764, %v139
  %v819 = vmul.f32 %v767, %v140
  %v820 = vmul.f32 %v772, %v141
  %v821 = vmul.f32 %v775, %v142
  %v822 = vmul.f32 %v780, %v143
  %v823 = vmul.f32 %v783, %v144
  %v824 = vmul.f32 %v788, %v145
  %v825 = vmul.f32 %v791, %v146
  %826 = vadd.xlane.f32.xlu0 %v794
  %v827 = vpop.xlane.xlu0 %826
  %828 = vadd.xlane.f32.xlu0 %v795
  %v829 = vpop.xlane.xlu0 %828
  %830 = vadd.xlane.f32.xlu0 %v796
  %v831 = vpop.xlane.xlu0 %830
  %832 = vadd.xlane.f32.xlu0 %v797
  %v833 = vpop.xlane.xlu0 %832
  %834 = vadd.xlane.f32.xlu0 %v798
  %v835 = vpop.xlane.xlu0 %834
  %836 = vadd.xlane.f32.xlu0 %v799
  %v837 = vpop.xlane.xlu0 %836
  %838 = vadd.xlane.f32.xlu0 %v800
  %v839 = vpop.xlane.xlu0 %838
  %840 = vadd.xlane.f32.xlu0 %v801
  %v841 = vpop.xlane.xlu0 %840
  %842 = vadd.xlane.f32.xlu0 %v802
  %v843 = vpop.xlane.xlu0 %842
  %844 = vadd.xlane.f32.xlu0 %v803
  %v845 = vpop.xlane.xlu0 %844
  %846 = vadd.xlane.f32.xlu0 %v804
  %v847 = vpop.xlane.xlu0 %846
  %848 = vadd.xlane.f32.xlu0 %v805
  %v849 = vpop.xlane.xlu0 %848
  %850 = vadd.xlane.f32.xlu0 %v806
  %v851 = vpop.xlane.xlu0 %850
  %852 = vadd.xlane.f32.xlu0 %v807
  %v853 = vpop.xlane.xlu0 %852
  %854 = vadd.xlane.f32.xlu0 %v808
  %v855 = vpop.xlane.xlu0 %854
  %856 = vadd.xlane.f32.xlu0 %v809
  %v857 = vpop.xlane.xlu0 %856
  %858 = vadd.xlane.f32.xlu0 %v810
  %v859 = vpop.xlane.xlu0 %858
  %860 = vadd.xlane.f32.xlu0 %v811
  %v861 = vpop.xlane.xlu0 %860
  %862 = vadd.xlane.f32.xlu0 %v812
  %v863 = vpop.xlane.xlu0 %862
  %864 = vadd.xlane.f32.xlu0 %v813
  %v865 = vpop.xlane.xlu0 %864
  %866 = vadd.xlane.f32.xlu0 %v814
  %v867 = vpop.xlane.xlu0 %866
  %868 = vadd.xlane.f32.xlu0 %v815
  %v869 = vpop.xlane.xlu0 %868
  %870 = vadd.xlane.f32.xlu0 %v816
  %v871 = vpop.xlane.xlu0 %870
  %872 = vadd.xlane.f32.xlu0 %v817
  %v873 = vpop.xlane.xlu0 %872
  %874 = vadd.xlane.f32.xlu0 %v818
  %v875 = vpop.xlane.xlu0 %874
  %876 = vadd.xlane.f32.xlu0 %v819
  %v877 = vpop.xlane.xlu0 %876
  %878 = vadd.xlane.f32.xlu0 %v820
  %v879 = vpop.xlane.xlu0 %878
  %880 = vadd.xlane.f32.xlu0 %v821
  %v881 = vpop.xlane.xlu0 %880
  %882 = vadd.xlane.f32.xlu0 %v822
  %v883 = vpop.xlane.xlu0 %882
  %884 = vadd.xlane.f32.xlu0 %v823
  %v885 = vpop.xlane.xlu0 %884
  %886 = vadd.xlane.f32.xlu0 %v824
  %v887 = vpop.xlane.xlu0 %886
  %888 = vadd.xlane.f32.xlu0 %v825
  %v889 = vpop.xlane.xlu0 %888
  %v890 = vmul.f32 %v827, 0.03125
  %v891 = vmul.f32 %v829, 0.03125
  %v892 = vmul.f32 %v831, 0.03125
  %v893 = vmul.f32 %v833, 0.03125
  %v894 = vmul.f32 %v835, 0.03125
  %v895 = vmul.f32 %v837, 0.03125
  %v896 = vmul.f32 %v839, 0.03125
  %v897 = vmul.f32 %v841, 0.03125
  %v898 = vmul.f32 %v843, 0.03125
  %v899 = vmul.f32 %v845, 0.03125
  %v900 = vmul.f32 %v847, 0.03125
  %v901 = vmul.f32 %v849, 0.03125
  %v902 = vmul.f32 %v851, 0.03125
  %v903 = vmul.f32 %v853, 0.03125
  %v904 = vmul.f32 %v855, 0.03125
  %v905 = vmul.f32 %v857, 0.03125
  %v906 = vmul.f32 %v859, 0.03125
  %v907 = vmul.f32 %v861, 0.03125
  %v908 = vmul.f32 %v863, 0.03125
  %v909 = vmul.f32 %v865, 0.03125
  %v910 = vmul.f32 %v867, 0.03125
  %v911 = vmul.f32 %v869, 0.03125
  %v912 = vmul.f32 %v871, 0.03125
  %v913 = vmul.f32 %v873, 0.03125
  %v914 = vmul.f32 %v875, 0.03125
  %v915 = vmul.f32 %v877, 0.03125
  %v916 = vmul.f32 %v879, 0.03125
  %v917 = vmul.f32 %v881, 0.03125
  %v918 = vmul.f32 %v883, 0.03125
  %v919 = vmul.f32 %v885, 0.03125
  %v920 = vmul.f32 %v887, 0.03125
  %v921 = vmul.f32 %v889, 0.03125
  %v922 = vsub.f32 %v794, %v890
  %v923 = vsub.f32 %v795, %v891
  %v924 = vsub.f32 %v796, %v892
  %v925 = vsub.f32 %v797, %v893
  %v926 = vsub.f32 %v798, %v894
  %v927 = vsub.f32 %v799, %v895
  %v928 = vsub.f32 %v800, %v896
  %v929 = vsub.f32 %v801, %v897
  %v930 = vsub.f32 %v802, %v898
  %v931 = vsub.f32 %v803, %v899
  %v932 = vsub.f32 %v804, %v900
  %v933 = vsub.f32 %v805, %v901
  %v934 = vsub.f32 %v806, %v902
  %v935 = vsub.f32 %v807, %v903
  %v936 = vsub.f32 %v808, %v904
  %v937 = vsub.f32 %v809, %v905
  %v938 = vsub.f32 %v810, %v906
  %v939 = vsub.f32 %v811, %v907
  %v940 = vsub.f32 %v812, %v908
  %v941 = vsub.f32 %v813, %v909
  %v942 = vsub.f32 %v814, %v910
  %v943 = vsub.f32 %v815, %v911
  %v944 = vsub.f32 %v816, %v912
  %v945 = vsub.f32 %v817, %v913
  %v946 = vsub.f32 %v818, %v914
  %v947 = vsub.f32 %v819, %v915
  %v948 = vsub.f32 %v820, %v916
  %v949 = vsub.f32 %v821, %v917
  %v950 = vsub.f32 %v822, %v918
  %v951 = vsub.f32 %v823, %v919
  %v952 = vsub.f32 %v824, %v920
  %v953 = vsub.f32 %v825, %v921
  %v954 = vadd.f32 %v922, %v923
  %v955 = vadd.f32 %v954, %v924
  %v956 = vadd.f32 %v955, %v925
  %v957 = vadd.f32 %v956, %v926
  %v958 = vadd.f32 %v957, %v927
  %v959 = vadd.f32 %v958, %v928
  %v960 = vadd.f32 %v959, %v929
  %v961 = vadd.f32 %v960, %v930
  %v962 = vadd.f32 %v961, %v931
  %v963 = vadd.f32 %v962, %v932
  %v964 = vadd.f32 %v963, %v933
  %v965 = vadd.f32 %v964, %v934
  %v966 = vadd.f32 %v965, %v935
  %v967 = vadd.f32 %v966, %v936
  %v968 = vadd.f32 %v967, %v937
  %v969 = vadd.f32 %v968, %v938
  %v970 = vadd.f32 %v969, %v939
  %v971 = vadd.f32 %v970, %v940
  %v972 = vadd.f32 %v971, %v941
  %v973 = vadd.f32 %v972, %v942
  %v974 = vadd.f32 %v973, %v943
  %v975 = vadd.f32 %v974, %v944
  %v976 = vadd.f32 %v975, %v945
  %v977 = vadd.f32 %v976, %v946
  %v978 = vadd.f32 %v977, %v947
  %v979 = vadd.f32 %v978, %v948
  %v980 = vadd.f32 %v979, %v949
  %v981 = vadd.f32 %v980, %v950
  %v982 = vadd.f32 %v981, %v951
  %v983 = vadd.f32 %v982, %v952
  %v984 = vadd.f32 %v983, %v953
  %v985 = vrot.slane %v984, 4
  %v986 = vadd.f32 %v984, %v985
  %v987 = vrot.slane %v986, 2
  %v988 = vadd.f32 %v986, %v987
  %v989 = vrot.slane %v988, 1
  %v990 = vadd.f32 %v988, %v989
  %v991 = vmul.f32 %v990, 0.055555556
  %v992 = vmul.f32 %v922, %v922
  %v993 = vmul.f32 %v923, %v923
  %v994 = vmul.f32 %v924, %v924
  %v995 = vmul.f32 %v925, %v925
  %v996 = vmul.f32 %v926, %v926
  %v997 = vmul.f32 %v927, %v927
  %v998 = vmul.f32 %v928, %v928
  %v999 = vmul.f32 %v929, %v929
  %v1000 = vmul.f32 %v930, %v930
  %v1001 = vmul.f32 %v931, %v931
  %v1002 = vmul.f32 %v932, %v932
  %v1003 = vmul.f32 %v933, %v933
  %v1004 = vmul.f32 %v934, %v934
  %v1005 = vmul.f32 %v935, %v935
  %v1006 = vmul.f32 %v936, %v936
  %v1007 = vmul.f32 %v937, %v937
  %v1008 = vmul.f32 %v938, %v938
  %v1009 = vmul.f32 %v939, %v939
  %v1010 = vmul.f32 %v940, %v940
  %v1011 = vmul.f32 %v941, %v941
  %v1012 = vmul.f32 %v942, %v942
  %v1013 = vmul.f32 %v943, %v943
  %v1014 = vmul.f32 %v944, %v944
  %v1015 = vmul.f32 %v945, %v945
  %v1016 = vmul.f32 %v946, %v946
  %v1017 = vmul.f32 %v947, %v947
  %v1018 = vmul.f32 %v948, %v948
  %v1019 = vmul.f32 %v949, %v949
  %v1020 = vmul.f32 %v950, %v950
  %v1021 = vmul.f32 %v951, %v951
  %v1022 = vmul.f32 %v952, %v952
  %v1023 = vmul.f32 %v953, %v953
  %v1024 = vadd.f32 %v992, %v993
  %v1025 = vadd.f32 %v1024, %v994
  %v1026 = vadd.f32 %v1025, %v995
  %v1027 = vadd.f32 %v1026, %v996
  %v1028 = vadd.f32 %v1027, %v997
  %v1029 = vadd.f32 %v1028, %v998
  %v1030 = vadd.f32 %v1029, %v999
  %v1031 = vadd.f32 %v1030, %v1000
  %v1032 = vadd.f32 %v1031, %v1001
  %v1033 = vadd.f32 %v1032, %v1002
  %v1034 = vadd.f32 %v1033, %v1003
  %v1035 = vadd.f32 %v1034, %v1004
  %v1036 = vadd.f32 %v1035, %v1005
  %v1037 = vadd.f32 %v1036, %v1006
  %v1038 = vadd.f32 %v1037, %v1007
  %v1039 = vadd.f32 %v1038, %v1008
  %v1040 = vadd.f32 %v1039, %v1009
  %v1041 = vadd.f32 %v1040, %v1010
  %v1042 = vadd.f32 %v1041, %v1011
  %v1043 = vadd.f32 %v1042, %v1012
  %v1044 = vadd.f32 %v1043, %v1013
  %v1045 = vadd.f32 %v1044, %v1014
  %v1046 = vadd.f32 %v1045, %v1015
  %v1047 = vadd.f32 %v1046, %v1016
  %v1048 = vadd.f32 %v1047, %v1017
  %v1049 = vadd.f32 %v1048, %v1018
  %v1050 = vadd.f32 %v1049, %v1019
  %v1051 = vadd.f32 %v1050, %v1020
  %v1052 = vadd.f32 %v1051, %v1021
  %v1053 = vadd.f32 %v1052, %v1022
  %v1054 = vadd.f32 %v1053, %v1023
  %v1055 = vrot.slane %v1054, 4
  %v1056 = vadd.f32 %v1054, %v1055
  %v1057 = vrot.slane %v1056, 2
  %v1058 = vadd.f32 %v1056, %v1057
  %v1059 = vrot.slane %v1058, 1
  %v1060 = vadd.f32 %v1058, %v1059
  %v1061 = vmul.f32 %v1060, 0.055555556
  %v1062 = vmul.f32 %v991, %v991
  %v1063 = vsub.f32 %v1061, %v1062
  %v1064 = vmax.f32 %v1063, 0.0
  %v1065 = vadd.f32 %v1064, 1e-05
  %v1066 = vrsqrt.pop %v1065
  %v1067 = vmul.f32 %v1066, %v227
  %v1068 = vmul.f32 %v991, %v1067
  %v1070 = vrot.slane %v1068, 7
  %v1072 = vsub.f32 %v227, %v1070
  %v1073 = vlaneseq
  %v1074 = vshrl.u32 %v1073, 7
  %v1075 = vsub.s32 1, %v1074
  %v1076 = vrot.slane %v1067, %v1075
  %v1077 = vmul.f32 %v922, %v1076
  %v1078 = vmul.f32 %v923, %v1076
  %v1079 = vmul.f32 %v924, %v1076
  %v1080 = vmul.f32 %v925, %v1076
  %v1081 = vmul.f32 %v926, %v1076
  %v1082 = vmul.f32 %v927, %v1076
  %v1083 = vmul.f32 %v928, %v1076
  %v1084 = vmul.f32 %v929, %v1076
  %v1085 = vmul.f32 %v930, %v1076
  %v1086 = vmul.f32 %v931, %v1076
  %v1087 = vmul.f32 %v932, %v1076
  %v1088 = vmul.f32 %v933, %v1076
  %v1089 = vmul.f32 %v934, %v1076
  %v1090 = vmul.f32 %v935, %v1076
  %v1091 = vmul.f32 %v936, %v1076
  %v1092 = vmul.f32 %v937, %v1076
  %v1093 = vmul.f32 %v938, %v1076
  %v1094 = vmul.f32 %v939, %v1076
  %v1095 = vmul.f32 %v940, %v1076
  %v1096 = vmul.f32 %v941, %v1076
  %v1097 = vmul.f32 %v942, %v1076
  %v1098 = vmul.f32 %v943, %v1076
  %v1099 = vmul.f32 %v944, %v1076
  %v1100 = vmul.f32 %v945, %v1076
  %v1101 = vmul.f32 %v946, %v1076
  %v1102 = vmul.f32 %v947, %v1076
  %v1103 = vmul.f32 %v948, %v1076
  %v1104 = vmul.f32 %v949, %v1076
  %v1105 = vmul.f32 %v950, %v1076
  %v1106 = vmul.f32 %v951, %v1076
  %v1107 = vmul.f32 %v952, %v1076
  %v1108 = vmul.f32 %v953, %v1076
  %v1109 = vlaneseq
  %v1110 = vshrl.u32 %v1109, 7
  %v1111 = vsub.s32 2, %v1110
  %v1112 = vrot.slane %v1072, %v1111
  %v1113 = vadd.f32 %v1077, %v1112
  %v1114 = vadd.f32 %v1078, %v1112
  %v1115 = vadd.f32 %v1079, %v1112
  %v1116 = vadd.f32 %v1080, %v1112
  %v1117 = vadd.f32 %v1081, %v1112
  %v1118 = vadd.f32 %v1082, %v1112
  %v1119 = vadd.f32 %v1083, %v1112
  %v1120 = vadd.f32 %v1084, %v1112
  %v1121 = vadd.f32 %v1085, %v1112
  %v1122 = vadd.f32 %v1086, %v1112
  %v1123 = vadd.f32 %v1087, %v1112
  %v1124 = vadd.f32 %v1088, %v1112
  %v1125 = vadd.f32 %v1089, %v1112
  %v1126 = vadd.f32 %v1090, %v1112
  %v1127 = vadd.f32 %v1091, %v1112
  %v1128 = vadd.f32 %v1092, %v1112
  %v1129 = vadd.f32 %v1093, %v1112
  %v1130 = vadd.f32 %v1094, %v1112
  %v1131 = vadd.f32 %v1095, %v1112
  %v1132 = vadd.f32 %v1096, %v1112
  %v1133 = vadd.f32 %v1097, %v1112
  %v1134 = vadd.f32 %v1098, %v1112
  %v1135 = vadd.f32 %v1099, %v1112
  %v1136 = vadd.f32 %v1100, %v1112
  %v1137 = vadd.f32 %v1101, %v1112
  %v1138 = vadd.f32 %v1102, %v1112
  %v1139 = vadd.f32 %v1103, %v1112
  %v1140 = vadd.f32 %v1104, %v1112
  %v1141 = vadd.f32 %v1105, %v1112
  %v1142 = vadd.f32 %v1106, %v1112
  %v1143 = vadd.f32 %v1107, %v1112
  %v1144 = vadd.f32 %v1108, %v1112
  %s1145 = scalar_lea.vmem %s2, 64
  %v1146 = vld [vmem:[%s1145] sm:$0xf]
  %v1147 = vld [vmem:[%s1145 + $0x4] sm:$0xf]
  %v1148 = vld [vmem:[%s1145 + $0x8] sm:$0xf]
  %v1149 = vld [vmem:[%s1145 + $0xc] sm:$0xf]
  %v1150 = vld [vmem:[%s1145 + $0x10] sm:$0xf]
  %v1151 = vld [vmem:[%s1145 + $0x14] sm:$0xf]
  %v1152 = vld [vmem:[%s1145 + $0x18] sm:$0xf]
  %v1153 = vld [vmem:[%s1145 + $0x1c] sm:$0xf]
  %v1154 = vld [vmem:[%s1145 + $0x20] sm:$0xf]
  %v1155 = vld [vmem:[%s1145 + $0x24] sm:$0xf]
  %v1156 = vld [vmem:[%s1145 + $0x28] sm:$0xf]
  %v1157 = vld [vmem:[%s1145 + $0x2c] sm:$0xf]
  %v1158 = vld [vmem:[%s1145 + $0x30] sm:$0xf]
  %v1159 = vld [vmem:[%s1145 + $0x34] sm:$0xf]
  %v1160 = vld [vmem:[%s1145 + $0x38] sm:$0xf]
  %v1161 = vld [vmem:[%s1145 + $0x3c] sm:$0xf]
  %s1162 = scalar_lea.vmem %s3, 8
  %v1163 = vld [vmem:[%s1162] sm:$0xff]
  %v1164 = vpack.c.bf16 %v1114, %v1113
  %v1165 = vpack.c.bf16 %v1116, %v1115
  %v1166 = vpack.c.bf16 %v1118, %v1117
  %v1167 = vpack.c.bf16 %v1120, %v1119
  %v1168 = vpack.c.bf16 %v1122, %v1121
  %v1169 = vpack.c.bf16 %v1124, %v1123
  %v1170 = vpack.c.bf16 %v1126, %v1125
  %v1171 = vpack.c.bf16 %v1128, %v1127
  %v1172 = vpack.c.bf16 %v1130, %v1129
  %v1173 = vpack.c.bf16 %v1132, %v1131
  %v1174 = vpack.c.bf16 %v1134, %v1133
  %v1175 = vpack.c.bf16 %v1136, %v1135
  %v1176 = vpack.c.bf16 %v1138, %v1137
  %v1177 = vpack.c.bf16 %v1140, %v1139
  %v1178 = vpack.c.bf16 %v1142, %v1141
  %v1179 = vpack.c.bf16 %v1144, %v1143
  %v1196 = vunpack.c.l.b16 %v1146
  %v1197 = vunpack.c.l.b16 %v1147
  %v1198 = vunpack.c.l.b16 %v1148
  %v1199 = vunpack.c.l.b16 %v1149
  %v1200 = vunpack.c.l.b16 %v1150
  %v1201 = vunpack.c.l.b16 %v1151
  %v1202 = vunpack.c.l.b16 %v1152
  %v1203 = vunpack.c.l.b16 %v1153
  %v1204 = vunpack.c.l.b16 %v1154
  %v1205 = vunpack.c.l.b16 %v1155
  %v1206 = vunpack.c.l.b16 %v1156
  %v1207 = vunpack.c.l.b16 %v1157
  %v1208 = vunpack.c.l.b16 %v1158
  %v1209 = vunpack.c.l.b16 %v1159
  %v1210 = vunpack.c.l.b16 %v1160
  %v1211 = vunpack.c.l.b16 %v1161
  %v1212 = vpack.c.b16 %v1197, %v1196
  %v1213 = vpack.c.b16 %v1199, %v1198
  %v1214 = vpack.c.b16 %v1201, %v1200
  %v1215 = vpack.c.b16 %v1203, %v1202
  %v1216 = vpack.c.b16 %v1205, %v1204
  %v1217 = vpack.c.b16 %v1207, %v1206
  %v1218 = vpack.c.b16 %v1209, %v1208
  %v1219 = vpack.c.b16 %v1211, %v1210
  %1228 = vmatprep.subr.bf16.mxu0 0
  %1229 = vmatpush1.bf16.msra.mxu0 %v1219
  %1230 = vmatprep.subr.bf16.mxu0 0
  %1231 = vmatpush1.bf16.msra.mxu0 %v1218
  %1232 = vmatprep.subr.bf16.mxu0 0
  %1233 = vmatpush1.bf16.msra.mxu0 %v1217
  %1234 = vmatprep.subr.bf16.mxu0 0
  %1235 = vmatpush1.bf16.msra.mxu0 %v1216
  %1236 = vmatprep.subr.bf16.mxu0 0
  %1237 = vmatpush1.bf16.msra.mxu0 %v1215
  %1238 = vmatprep.subr.bf16.mxu0 0
  %1239 = vmatpush1.bf16.msra.mxu0 %v1214
  %1240 = vmatprep.subr.bf16.mxu0 0
  %1241 = vmatpush1.bf16.msra.mxu0 %v1213
  %1242 = vmatprep.subr.bf16.mxu0 0
  %1243 = vmatpush1.bf16.msra.mxu0 %v1212
  %1244 = vmatprep.subr.bf16.mxu0 0
  %1245 = vmatpush2.bf16.msra.mxu0 0
  %1246 = vmatprep.subr.bf16.mxu0 0
  %1247 = vmatpush2.bf16.msra.mxu0 0
  %1248 = vmatprep.subr.bf16.mxu0 0
  %1249 = vmatpush2.bf16.msra.mxu0 0
  %1250 = vmatprep.subr.bf16.mxu0 0
  %1251 = vmatpush2.bf16.msra.mxu0 0
  %1252 = vmatprep.subr.bf16.mxu0 0
  %1253 = vmatpush2.bf16.msra.mxu0 0
  %1254 = vmatprep.subr.bf16.mxu0 0
  %1255 = vmatpush2.bf16.msra.mxu0 0
  %1256 = vmatprep.subr.bf16.mxu0 0
  %1257 = vmatpush2.bf16.msra.mxu0 0
  %1258 = vmatprep.subr.bf16.mxu0 0
  %1259 = vmatpush2.bf16.msra.mxu0 0
  %1260 = vmatprep.mubr.bf16.mxu0 0
  %1261 = vmatmul.mubr.bf16.gmra.mxu0 %v1164
  %v1262 = vpop.f32.mrf.mxu0
  %v1263 = vadd.f32 0.0, %v1262
  %v1264 = vpop.f32.mrf.mxu0
  %v1265 = vpop.f32.mrf.mxu0
  %v1266 = vadd.f32 0.0, %v1265
  %v1267 = vpop.f32.mrf.mxu0
  %1268 = vmatprep.mubr.bf16.mxu0 0
  %1269 = vmatmul.mubr.bf16.gmra.mxu0 %v1165
  %v1270 = vpop.f32.mrf.mxu0
  %v1271 = vadd.f32 0.0, %v1270
  %v1272 = vpop.f32.mrf.mxu0
  %v1273 = vpop.f32.mrf.mxu0
  %v1274 = vadd.f32 0.0, %v1273
  %v1275 = vpop.f32.mrf.mxu0
  %1276 = vmatprep.mubr.bf16.mxu0 0
  %1277 = vmatmul.mubr.bf16.gmra.mxu0 %v1166
  %v1278 = vpop.f32.mrf.mxu0
  %v1279 = vadd.f32 0.0, %v1278
  %v1280 = vpop.f32.mrf.mxu0
  %v1281 = vpop.f32.mrf.mxu0
  %v1282 = vadd.f32 0.0, %v1281
  %v1283 = vpop.f32.mrf.mxu0
  %1284 = vmatprep.mubr.bf16.mxu0 0
  %1285 = vmatmul.mubr.bf16.gmra.mxu0 %v1167
  %v1286 = vpop.f32.mrf.mxu0
  %v1287 = vadd.f32 0.0, %v1286
  %v1288 = vpop.f32.mrf.mxu0
  %v1289 = vpop.f32.mrf.mxu0
  %v1290 = vadd.f32 0.0, %v1289
  %v1291 = vpop.f32.mrf.mxu0
  %1292 = vmatprep.mubr.bf16.mxu0 0
  %1293 = vmatmul.mubr.bf16.gmra.mxu0 %v1168
  %v1294 = vpop.f32.mrf.mxu0
  %v1295 = vadd.f32 0.0, %v1294
  %v1296 = vpop.f32.mrf.mxu0
  %v1297 = vpop.f32.mrf.mxu0
  %v1298 = vadd.f32 0.0, %v1297
  %v1299 = vpop.f32.mrf.mxu0
  %1300 = vmatprep.mubr.bf16.mxu0 0
  %1301 = vmatmul.mubr.bf16.gmra.mxu0 %v1169
  %v1302 = vpop.f32.mrf.mxu0
  %v1303 = vadd.f32 0.0, %v1302
  %v1304 = vpop.f32.mrf.mxu0
  %v1305 = vpop.f32.mrf.mxu0
  %v1306 = vadd.f32 0.0, %v1305
  %v1307 = vpop.f32.mrf.mxu0
  %1308 = vmatprep.mubr.bf16.mxu0 0
  %1309 = vmatmul.mubr.bf16.gmra.mxu0 %v1170
  %v1310 = vpop.f32.mrf.mxu0
  %v1311 = vadd.f32 0.0, %v1310
  %v1312 = vpop.f32.mrf.mxu0
  %v1313 = vpop.f32.mrf.mxu0
  %v1314 = vadd.f32 0.0, %v1313
  %v1315 = vpop.f32.mrf.mxu0
  %1316 = vmatprep.mubr.bf16.mxu0 0
  %1317 = vmatmul.mubr.bf16.gmra.mxu0 %v1171
  %v1318 = vpop.f32.mrf.mxu0
  %v1319 = vadd.f32 0.0, %v1318
  %v1320 = vpop.f32.mrf.mxu0
  %v1321 = vpop.f32.mrf.mxu0
  %v1322 = vadd.f32 0.0, %v1321
  %v1323 = vpop.f32.mrf.mxu0
  %1324 = vmatprep.mubr.bf16.mxu0 0
  %1325 = vmatmul.mubr.bf16.gmra.mxu0 %v1172
  %v1326 = vpop.f32.mrf.mxu0
  %v1327 = vadd.f32 0.0, %v1326
  %v1328 = vpop.f32.mrf.mxu0
  %v1329 = vpop.f32.mrf.mxu0
  %v1330 = vadd.f32 0.0, %v1329
  %v1331 = vpop.f32.mrf.mxu0
  %1332 = vmatprep.mubr.bf16.mxu0 0
  %1333 = vmatmul.mubr.bf16.gmra.mxu0 %v1173
  %v1334 = vpop.f32.mrf.mxu0
  %v1335 = vadd.f32 0.0, %v1334
  %v1336 = vpop.f32.mrf.mxu0
  %v1337 = vpop.f32.mrf.mxu0
  %v1338 = vadd.f32 0.0, %v1337
  %v1339 = vpop.f32.mrf.mxu0
  %1340 = vmatprep.mubr.bf16.mxu0 0
  %1341 = vmatmul.mubr.bf16.gmra.mxu0 %v1174
  %v1342 = vpop.f32.mrf.mxu0
  %v1343 = vadd.f32 0.0, %v1342
  %v1344 = vpop.f32.mrf.mxu0
  %v1345 = vpop.f32.mrf.mxu0
  %v1346 = vadd.f32 0.0, %v1345
  %v1347 = vpop.f32.mrf.mxu0
  %1348 = vmatprep.mubr.bf16.mxu0 0
  %1349 = vmatmul.mubr.bf16.gmra.mxu0 %v1175
  %v1350 = vpop.f32.mrf.mxu0
  %v1351 = vadd.f32 0.0, %v1350
  %v1352 = vpop.f32.mrf.mxu0
  %v1353 = vpop.f32.mrf.mxu0
  %v1354 = vadd.f32 0.0, %v1353
  %v1355 = vpop.f32.mrf.mxu0
  %1356 = vmatprep.mubr.bf16.mxu0 0
  %1357 = vmatmul.mubr.bf16.gmra.mxu0 %v1176
  %v1358 = vpop.f32.mrf.mxu0
  %v1359 = vadd.f32 0.0, %v1358
  %v1360 = vpop.f32.mrf.mxu0
  %v1361 = vpop.f32.mrf.mxu0
  %v1362 = vadd.f32 0.0, %v1361
  %v1363 = vpop.f32.mrf.mxu0
  %1364 = vmatprep.mubr.bf16.mxu0 0
  %1365 = vmatmul.mubr.bf16.gmra.mxu0 %v1177
  %v1366 = vpop.f32.mrf.mxu0
  %v1367 = vadd.f32 0.0, %v1366
  %v1368 = vpop.f32.mrf.mxu0
  %v1369 = vpop.f32.mrf.mxu0
  %v1370 = vadd.f32 0.0, %v1369
  %v1371 = vpop.f32.mrf.mxu0
  %1372 = vmatprep.mubr.bf16.mxu0 0
  %1373 = vmatmul.mubr.bf16.gmra.mxu0 %v1178
  %v1374 = vpop.f32.mrf.mxu0
  %v1375 = vadd.f32 0.0, %v1374
  %v1376 = vpop.f32.mrf.mxu0
  %v1377 = vpop.f32.mrf.mxu0
  %v1378 = vadd.f32 0.0, %v1377
  %v1379 = vpop.f32.mrf.mxu0
  %1380 = vmatprep.mubr.bf16.mxu0 0
  %1381 = vmatmul.mubr.bf16.gmra.mxu0 %v1179
  %v1382 = vpop.f32.mrf.mxu0
  %v1383 = vadd.f32 0.0, %v1382
  %v1384 = vpop.f32.mrf.mxu0
  %v1385 = vpop.f32.mrf.mxu0
  %v1386 = vadd.f32 0.0, %v1385
  %v1387 = vpop.f32.mrf.mxu0
  %1388 = vdwg.mxu0
  %v1389 = vpack.c.bf16 %v1266, %v1263
  %v1390 = vpack.c.bf16 %v1274, %v1271
  %v1391 = vpack.c.bf16 %v1282, %v1279
  %v1392 = vpack.c.bf16 %v1290, %v1287
  %v1393 = vpack.c.bf16 %v1298, %v1295
  %v1394 = vpack.c.bf16 %v1306, %v1303
  %v1395 = vpack.c.bf16 %v1314, %v1311
  %v1396 = vpack.c.bf16 %v1322, %v1319
  %v1397 = vpack.c.bf16 %v1330, %v1327
  %v1398 = vpack.c.bf16 %v1338, %v1335
  %v1399 = vpack.c.bf16 %v1346, %v1343
  %v1400 = vpack.c.bf16 %v1354, %v1351
  %v1401 = vpack.c.bf16 %v1362, %v1359
  %v1402 = vpack.c.bf16 %v1370, %v1367
  %v1403 = vpack.c.bf16 %v1378, %v1375
  %v1404 = vpack.c.bf16 %v1386, %v1383
  %v1405 = vlaneseq
  %v1406 = vshrl.u32 %v1405, 7
  %v1407 = vsub.s32 0, %v1406
  %v1408 = vrot.slane %v1163, %v1407
  %1409 = vmatprep.subr.bf16.mxu0 0
  %1410 = vmatpush1.bf16.msra.mxu0 %v1396
  %1411 = vmatprep.subr.bf16.mxu0 0
  %1412 = vmatpush1.bf16.msra.mxu0 %v1395
  %1413 = vmatprep.subr.bf16.mxu0 0
  %1414 = vmatpush1.bf16.msra.mxu0 %v1394
  %1415 = vmatprep.subr.bf16.mxu0 0
  %1416 = vmatpush1.bf16.msra.mxu0 %v1393
  %1417 = vmatprep.subr.bf16.mxu0 0
  %1418 = vmatpush1.bf16.msra.mxu0 %v1392
  %1419 = vmatprep.subr.bf16.mxu0 0
  %1420 = vmatpush1.bf16.msra.mxu0 %v1391
  %1421 = vmatprep.subr.bf16.mxu0 0
  %1422 = vmatpush1.bf16.msra.mxu0 %v1390
  %1423 = vmatprep.subr.bf16.mxu0 0
  %1424 = vmatpush1.bf16.msra.mxu0 %v1389
  %1425 = vmatprep.subr.bf16.mxu0 0
  %1426 = vmatpush2.bf16.msra.mxu0 %v1404
  %1427 = vmatprep.subr.bf16.mxu0 0
  %1428 = vmatpush2.bf16.msra.mxu0 %v1403
  %1429 = vmatprep.subr.bf16.mxu0 0
  %1430 = vmatpush2.bf16.msra.mxu0 %v1402
  %1431 = vmatprep.subr.bf16.mxu0 0
  %1432 = vmatpush2.bf16.msra.mxu0 %v1401
  %1433 = vmatprep.subr.bf16.mxu0 0
  %1434 = vmatpush2.bf16.msra.mxu0 %v1400
  %1435 = vmatprep.subr.bf16.mxu0 0
  %1436 = vmatpush2.bf16.msra.mxu0 %v1399
  %1437 = vmatprep.subr.bf16.mxu0 0
  %1438 = vmatpush2.bf16.msra.mxu0 %v1398
  %1439 = vmatprep.subr.bf16.mxu0 0
  %1440 = vmatpush2.bf16.msra.mxu0 %v1397
  %1441 = vmatprep.mubr.bf16.mxu0 %v570
  %1442 = vmatmul.mubr.bf16.gmra.mxu0 %v569
  %v1443 = vpop.f32.mrf.mxu0
  %v1444 = vadd.f32 %v1408, %v1443
  %v1445 = vpop.f32.mrf.mxu0
  %v1446 = vpop.f32.mrf.mxu0
  %v1447 = vadd.f32 %v1408, %v1446
  %v1448 = vpop.f32.mrf.mxu0
  %1449 = vmatprep.mubr.bf16.mxu0 %v572
  %1450 = vmatmul.mubr.bf16.gmra.mxu0 %v571
  %v1451 = vpop.f32.mrf.mxu0
  %v1452 = vadd.f32 %v1408, %v1451
  %v1453 = vpop.f32.mrf.mxu0
  %v1454 = vpop.f32.mrf.mxu0
  %v1455 = vadd.f32 %v1408, %v1454
  %v1456 = vpop.f32.mrf.mxu0
  %1457 = vmatprep.mubr.bf16.mxu0 %v574
  %1458 = vmatmul.mubr.bf16.gmra.mxu0 %v573
  %v1459 = vpop.f32.mrf.mxu0
  %v1460 = vadd.f32 %v1408, %v1459
  %v1461 = vpop.f32.mrf.mxu0
  %v1462 = vpop.f32.mrf.mxu0
  %v1463 = vadd.f32 %v1408, %v1462
  %v1464 = vpop.f32.mrf.mxu0
  %1465 = vmatprep.mubr.bf16.mxu0 %v576
  %1466 = vmatmul.mubr.bf16.gmra.mxu0 %v575
  %v1467 = vpop.f32.mrf.mxu0
  %v1468 = vadd.f32 %v1408, %v1467
  %v1469 = vpop.f32.mrf.mxu0
  %v1470 = vpop.f32.mrf.mxu0
  %v1471 = vadd.f32 %v1408, %v1470
  %v1472 = vpop.f32.mrf.mxu0
  %1473 = vmatprep.mubr.bf16.mxu0 %v578
  %1474 = vmatmul.mubr.bf16.gmra.mxu0 %v577
  %v1475 = vpop.f32.mrf.mxu0
  %v1476 = vadd.f32 %v1408, %v1475
  %v1477 = vpop.f32.mrf.mxu0
  %v1478 = vpop.f32.mrf.mxu0
  %v1479 = vadd.f32 %v1408, %v1478
  %v1480 = vpop.f32.mrf.mxu0
  %1481 = vmatprep.mubr.bf16.mxu0 %v580
  %1482 = vmatmul.mubr.bf16.gmra.mxu0 %v579
  %v1483 = vpop.f32.mrf.mxu0
  %v1484 = vadd.f32 %v1408, %v1483
  %v1485 = vpop.f32.mrf.mxu0
  %v1486 = vpop.f32.mrf.mxu0
  %v1487 = vadd.f32 %v1408, %v1486
  %v1488 = vpop.f32.mrf.mxu0
  %1489 = vmatprep.mubr.bf16.mxu0 %v582
  %1490 = vmatmul.mubr.bf16.gmra.mxu0 %v581
  %v1491 = vpop.f32.mrf.mxu0
  %v1492 = vadd.f32 %v1408, %v1491
  %v1493 = vpop.f32.mrf.mxu0
  %v1494 = vpop.f32.mrf.mxu0
  %v1495 = vadd.f32 %v1408, %v1494
  %v1496 = vpop.f32.mrf.mxu0
  %1497 = vmatprep.mubr.bf16.mxu0 %v584
  %1498 = vmatmul.mubr.bf16.gmra.mxu0 %v583
  %v1499 = vpop.f32.mrf.mxu0
  %v1500 = vadd.f32 %v1408, %v1499
  %v1501 = vpop.f32.mrf.mxu0
  %v1502 = vpop.f32.mrf.mxu0
  %v1503 = vadd.f32 %v1408, %v1502
  %v1504 = vpop.f32.mrf.mxu0
  %1505 = vmatprep.mubr.bf16.mxu0 %v586
  %1506 = vmatmul.mubr.bf16.gmra.mxu0 %v585
  %v1507 = vpop.f32.mrf.mxu0
  %v1508 = vadd.f32 %v1408, %v1507
  %v1509 = vpop.f32.mrf.mxu0
  %v1510 = vpop.f32.mrf.mxu0
  %v1511 = vadd.f32 %v1408, %v1510
  %v1512 = vpop.f32.mrf.mxu0
  %1513 = vmatprep.mubr.bf16.mxu0 %v588
  %1514 = vmatmul.mubr.bf16.gmra.mxu0 %v587
  %v1515 = vpop.f32.mrf.mxu0
  %v1516 = vadd.f32 %v1408, %v1515
  %v1517 = vpop.f32.mrf.mxu0
  %v1518 = vpop.f32.mrf.mxu0
  %v1519 = vadd.f32 %v1408, %v1518
  %v1520 = vpop.f32.mrf.mxu0
  %1521 = vmatprep.mubr.bf16.mxu0 %v590
  %1522 = vmatmul.mubr.bf16.gmra.mxu0 %v589
  %v1523 = vpop.f32.mrf.mxu0
  %v1524 = vadd.f32 %v1408, %v1523
  %v1525 = vpop.f32.mrf.mxu0
  %v1526 = vpop.f32.mrf.mxu0
  %v1527 = vadd.f32 %v1408, %v1526
  %v1528 = vpop.f32.mrf.mxu0
  %1529 = vmatprep.mubr.bf16.mxu0 %v592
  %1530 = vmatmul.mubr.bf16.gmra.mxu0 %v591
  %v1531 = vpop.f32.mrf.mxu0
  %v1532 = vadd.f32 %v1408, %v1531
  %v1533 = vpop.f32.mrf.mxu0
  %v1534 = vpop.f32.mrf.mxu0
  %v1535 = vadd.f32 %v1408, %v1534
  %v1536 = vpop.f32.mrf.mxu0
  %1537 = vmatprep.mubr.bf16.mxu0 %v594
  %1538 = vmatmul.mubr.bf16.gmra.mxu0 %v593
  %v1539 = vpop.f32.mrf.mxu0
  %v1540 = vadd.f32 %v1408, %v1539
  %v1541 = vpop.f32.mrf.mxu0
  %v1542 = vpop.f32.mrf.mxu0
  %v1543 = vadd.f32 %v1408, %v1542
  %v1544 = vpop.f32.mrf.mxu0
  %1545 = vmatprep.mubr.bf16.mxu0 %v596
  %1546 = vmatmul.mubr.bf16.gmra.mxu0 %v595
  %v1547 = vpop.f32.mrf.mxu0
  %v1548 = vadd.f32 %v1408, %v1547
  %v1549 = vpop.f32.mrf.mxu0
  %v1550 = vpop.f32.mrf.mxu0
  %v1551 = vadd.f32 %v1408, %v1550
  %v1552 = vpop.f32.mrf.mxu0
  %1553 = vmatprep.mubr.bf16.mxu0 %v598
  %1554 = vmatmul.mubr.bf16.gmra.mxu0 %v597
  %v1555 = vpop.f32.mrf.mxu0
  %v1556 = vadd.f32 %v1408, %v1555
  %v1557 = vpop.f32.mrf.mxu0
  %v1558 = vpop.f32.mrf.mxu0
  %v1559 = vadd.f32 %v1408, %v1558
  %v1560 = vpop.f32.mrf.mxu0
  %1561 = vmatprep.mubr.bf16.mxu0 %v600
  %1562 = vmatmul.mubr.bf16.gmra.mxu0 %v599
  %v1563 = vpop.f32.mrf.mxu0
  %v1564 = vadd.f32 %v1408, %v1563
  %v1565 = vpop.f32.mrf.mxu0
  %v1566 = vpop.f32.mrf.mxu0
  %v1567 = vadd.f32 %v1408, %v1566
  %v1568 = vpop.f32.mrf.mxu0
  %1569 = vdwg.mxu0
  %v1570 = vmul.f32 %v1444, %v115
  %v1571 = vmul.f32 %v1447, %v116
  %v1572 = vmul.f32 %v1452, %v117
  %v1573 = vmul.f32 %v1455, %v118
  %v1574 = vmul.f32 %v1460, %v119
  %v1575 = vmul.f32 %v1463, %v120
  %v1576 = vmul.f32 %v1468, %v121
  %v1577 = vmul.f32 %v1471, %v122
  %v1578 = vmul.f32 %v1476, %v123
  %v1579 = vmul.f32 %v1479, %v124
  %v1580 = vmul.f32 %v1484, %v125
  %v1581 = vmul.f32 %v1487, %v126
  %v1582 = vmul.f32 %v1492, %v127
  %v1583 = vmul.f32 %v1495, %v128
  %v1584 = vmul.f32 %v1500, %v129
  %v1585 = vmul.f32 %v1503, %v130
  %v1586 = vmul.f32 %v1508, %v131
  %v1587 = vmul.f32 %v1511, %v132
  %v1588 = vmul.f32 %v1516, %v133
  %v1589 = vmul.f32 %v1519, %v134
  %v1590 = vmul.f32 %v1524, %v135
  %v1591 = vmul.f32 %v1527, %v136
  %v1592 = vmul.f32 %v1532, %v137
  %v1593 = vmul.f32 %v1535, %v138
  %v1594 = vmul.f32 %v1540, %v139
  %v1595 = vmul.f32 %v1543, %v140
  %v1596 = vmul.f32 %v1548, %v141
  %v1597 = vmul.f32 %v1551, %v142
  %v1598 = vmul.f32 %v1556, %v143
  %v1599 = vmul.f32 %v1559, %v144
  %v1600 = vmul.f32 %v1564, %v145
  %v1601 = vmul.f32 %v1567, %v146
  %1602 = vadd.xlane.f32.xlu0 %v1570
  %v1603 = vpop.xlane.xlu0 %1602
  %1604 = vadd.xlane.f32.xlu0 %v1571
  %v1605 = vpop.xlane.xlu0 %1604
  %1606 = vadd.xlane.f32.xlu0 %v1572
  %v1607 = vpop.xlane.xlu0 %1606
  %1608 = vadd.xlane.f32.xlu0 %v1573
  %v1609 = vpop.xlane.xlu0 %1608
  %1610 = vadd.xlane.f32.xlu0 %v1574
  %v1611 = vpop.xlane.xlu0 %1610
  %1612 = vadd.xlane.f32.xlu0 %v1575
  %v1613 = vpop.xlane.xlu0 %1612
  %1614 = vadd.xlane.f32.xlu0 %v1576
  %v1615 = vpop.xlane.xlu0 %1614
  %1616 = vadd.xlane.f32.xlu0 %v1577
  %v1617 = vpop.xlane.xlu0 %1616
  %1618 = vadd.xlane.f32.xlu0 %v1578
  %v1619 = vpop.xlane.xlu0 %1618
  %1620 = vadd.xlane.f32.xlu0 %v1579
  %v1621 = vpop.xlane.xlu0 %1620
  %1622 = vadd.xlane.f32.xlu0 %v1580
  %v1623 = vpop.xlane.xlu0 %1622
  %1624 = vadd.xlane.f32.xlu0 %v1581
  %v1625 = vpop.xlane.xlu0 %1624
  %1626 = vadd.xlane.f32.xlu0 %v1582
  %v1627 = vpop.xlane.xlu0 %1626
  %1628 = vadd.xlane.f32.xlu0 %v1583
  %v1629 = vpop.xlane.xlu0 %1628
  %1630 = vadd.xlane.f32.xlu0 %v1584
  %v1631 = vpop.xlane.xlu0 %1630
  %1632 = vadd.xlane.f32.xlu0 %v1585
  %v1633 = vpop.xlane.xlu0 %1632
  %1634 = vadd.xlane.f32.xlu0 %v1586
  %v1635 = vpop.xlane.xlu0 %1634
  %1636 = vadd.xlane.f32.xlu0 %v1587
  %v1637 = vpop.xlane.xlu0 %1636
  %1638 = vadd.xlane.f32.xlu0 %v1588
  %v1639 = vpop.xlane.xlu0 %1638
  %1640 = vadd.xlane.f32.xlu0 %v1589
  %v1641 = vpop.xlane.xlu0 %1640
  %1642 = vadd.xlane.f32.xlu0 %v1590
  %v1643 = vpop.xlane.xlu0 %1642
  %1644 = vadd.xlane.f32.xlu0 %v1591
  %v1645 = vpop.xlane.xlu0 %1644
  %1646 = vadd.xlane.f32.xlu0 %v1592
  %v1647 = vpop.xlane.xlu0 %1646
  %1648 = vadd.xlane.f32.xlu0 %v1593
  %v1649 = vpop.xlane.xlu0 %1648
  %1650 = vadd.xlane.f32.xlu0 %v1594
  %v1651 = vpop.xlane.xlu0 %1650
  %1652 = vadd.xlane.f32.xlu0 %v1595
  %v1653 = vpop.xlane.xlu0 %1652
  %1654 = vadd.xlane.f32.xlu0 %v1596
  %v1655 = vpop.xlane.xlu0 %1654
  %1656 = vadd.xlane.f32.xlu0 %v1597
  %v1657 = vpop.xlane.xlu0 %1656
  %1658 = vadd.xlane.f32.xlu0 %v1598
  %v1659 = vpop.xlane.xlu0 %1658
  %1660 = vadd.xlane.f32.xlu0 %v1599
  %v1661 = vpop.xlane.xlu0 %1660
  %1662 = vadd.xlane.f32.xlu0 %v1600
  %v1663 = vpop.xlane.xlu0 %1662
  %1664 = vadd.xlane.f32.xlu0 %v1601
  %v1665 = vpop.xlane.xlu0 %1664
  %v1666 = vmul.f32 %v1603, 0.03125
  %v1667 = vmul.f32 %v1605, 0.03125
  %v1668 = vmul.f32 %v1607, 0.03125
  %v1669 = vmul.f32 %v1609, 0.03125
  %v1670 = vmul.f32 %v1611, 0.03125
  %v1671 = vmul.f32 %v1613, 0.03125
  %v1672 = vmul.f32 %v1615, 0.03125
  %v1673 = vmul.f32 %v1617, 0.03125
  %v1674 = vmul.f32 %v1619, 0.03125
  %v1675 = vmul.f32 %v1621, 0.03125
  %v1676 = vmul.f32 %v1623, 0.03125
  %v1677 = vmul.f32 %v1625, 0.03125
  %v1678 = vmul.f32 %v1627, 0.03125
  %v1679 = vmul.f32 %v1629, 0.03125
  %v1680 = vmul.f32 %v1631, 0.03125
  %v1681 = vmul.f32 %v1633, 0.03125
  %v1682 = vmul.f32 %v1635, 0.03125
  %v1683 = vmul.f32 %v1637, 0.03125
  %v1684 = vmul.f32 %v1639, 0.03125
  %v1685 = vmul.f32 %v1641, 0.03125
  %v1686 = vmul.f32 %v1643, 0.03125
  %v1687 = vmul.f32 %v1645, 0.03125
  %v1688 = vmul.f32 %v1647, 0.03125
  %v1689 = vmul.f32 %v1649, 0.03125
  %v1690 = vmul.f32 %v1651, 0.03125
  %v1691 = vmul.f32 %v1653, 0.03125
  %v1692 = vmul.f32 %v1655, 0.03125
  %v1693 = vmul.f32 %v1657, 0.03125
  %v1694 = vmul.f32 %v1659, 0.03125
  %v1695 = vmul.f32 %v1661, 0.03125
  %v1696 = vmul.f32 %v1663, 0.03125
  %v1697 = vmul.f32 %v1665, 0.03125
  %v1698 = vsub.f32 %v1570, %v1666
  %v1699 = vsub.f32 %v1571, %v1667
  %v1700 = vsub.f32 %v1572, %v1668
  %v1701 = vsub.f32 %v1573, %v1669
  %v1702 = vsub.f32 %v1574, %v1670
  %v1703 = vsub.f32 %v1575, %v1671
  %v1704 = vsub.f32 %v1576, %v1672
  %v1705 = vsub.f32 %v1577, %v1673
  %v1706 = vsub.f32 %v1578, %v1674
  %v1707 = vsub.f32 %v1579, %v1675
  %v1708 = vsub.f32 %v1580, %v1676
  %v1709 = vsub.f32 %v1581, %v1677
  %v1710 = vsub.f32 %v1582, %v1678
  %v1711 = vsub.f32 %v1583, %v1679
  %v1712 = vsub.f32 %v1584, %v1680
  %v1713 = vsub.f32 %v1585, %v1681
  %v1714 = vsub.f32 %v1586, %v1682
  %v1715 = vsub.f32 %v1587, %v1683
  %v1716 = vsub.f32 %v1588, %v1684
  %v1717 = vsub.f32 %v1589, %v1685
  %v1718 = vsub.f32 %v1590, %v1686
  %v1719 = vsub.f32 %v1591, %v1687
  %v1720 = vsub.f32 %v1592, %v1688
  %v1721 = vsub.f32 %v1593, %v1689
  %v1722 = vsub.f32 %v1594, %v1690
  %v1723 = vsub.f32 %v1595, %v1691
  %v1724 = vsub.f32 %v1596, %v1692
  %v1725 = vsub.f32 %v1597, %v1693
  %v1726 = vsub.f32 %v1598, %v1694
  %v1727 = vsub.f32 %v1599, %v1695
  %v1728 = vsub.f32 %v1600, %v1696
  %v1729 = vsub.f32 %v1601, %v1697
  %v1730 = vadd.f32 %v1698, %v1699
  %v1731 = vadd.f32 %v1730, %v1700
  %v1732 = vadd.f32 %v1731, %v1701
  %v1733 = vadd.f32 %v1732, %v1702
  %v1734 = vadd.f32 %v1733, %v1703
  %v1735 = vadd.f32 %v1734, %v1704
  %v1736 = vadd.f32 %v1735, %v1705
  %v1737 = vadd.f32 %v1736, %v1706
  %v1738 = vadd.f32 %v1737, %v1707
  %v1739 = vadd.f32 %v1738, %v1708
  %v1740 = vadd.f32 %v1739, %v1709
  %v1741 = vadd.f32 %v1740, %v1710
  %v1742 = vadd.f32 %v1741, %v1711
  %v1743 = vadd.f32 %v1742, %v1712
  %v1744 = vadd.f32 %v1743, %v1713
  %v1745 = vadd.f32 %v1744, %v1714
  %v1746 = vadd.f32 %v1745, %v1715
  %v1747 = vadd.f32 %v1746, %v1716
  %v1748 = vadd.f32 %v1747, %v1717
  %v1749 = vadd.f32 %v1748, %v1718
  %v1750 = vadd.f32 %v1749, %v1719
  %v1751 = vadd.f32 %v1750, %v1720
  %v1752 = vadd.f32 %v1751, %v1721
  %v1753 = vadd.f32 %v1752, %v1722
  %v1754 = vadd.f32 %v1753, %v1723
  %v1755 = vadd.f32 %v1754, %v1724
  %v1756 = vadd.f32 %v1755, %v1725
  %v1757 = vadd.f32 %v1756, %v1726
  %v1758 = vadd.f32 %v1757, %v1727
  %v1759 = vadd.f32 %v1758, %v1728
  %v1760 = vadd.f32 %v1759, %v1729
  %v1761 = vrot.slane %v1760, 4
  %v1762 = vadd.f32 %v1760, %v1761
  %v1763 = vrot.slane %v1762, 2
  %v1764 = vadd.f32 %v1762, %v1763
  %v1765 = vrot.slane %v1764, 1
  %v1766 = vadd.f32 %v1764, %v1765
  %v1767 = vmul.f32 %v1766, 0.055555556
  %v1768 = vmul.f32 %v1698, %v1698
  %v1769 = vmul.f32 %v1699, %v1699
  %v1770 = vmul.f32 %v1700, %v1700
  %v1771 = vmul.f32 %v1701, %v1701
  %v1772 = vmul.f32 %v1702, %v1702
  %v1773 = vmul.f32 %v1703, %v1703
  %v1774 = vmul.f32 %v1704, %v1704
  %v1775 = vmul.f32 %v1705, %v1705
  %v1776 = vmul.f32 %v1706, %v1706
  %v1777 = vmul.f32 %v1707, %v1707
  %v1778 = vmul.f32 %v1708, %v1708
  %v1779 = vmul.f32 %v1709, %v1709
  %v1780 = vmul.f32 %v1710, %v1710
  %v1781 = vmul.f32 %v1711, %v1711
  %v1782 = vmul.f32 %v1712, %v1712
  %v1783 = vmul.f32 %v1713, %v1713
  %v1784 = vmul.f32 %v1714, %v1714
  %v1785 = vmul.f32 %v1715, %v1715
  %v1786 = vmul.f32 %v1716, %v1716
  %v1787 = vmul.f32 %v1717, %v1717
  %v1788 = vmul.f32 %v1718, %v1718
  %v1789 = vmul.f32 %v1719, %v1719
  %v1790 = vmul.f32 %v1720, %v1720
  %v1791 = vmul.f32 %v1721, %v1721
  %v1792 = vmul.f32 %v1722, %v1722
  %v1793 = vmul.f32 %v1723, %v1723
  %v1794 = vmul.f32 %v1724, %v1724
  %v1795 = vmul.f32 %v1725, %v1725
  %v1796 = vmul.f32 %v1726, %v1726
  %v1797 = vmul.f32 %v1727, %v1727
  %v1798 = vmul.f32 %v1728, %v1728
  %v1799 = vmul.f32 %v1729, %v1729
  %v1800 = vadd.f32 %v1768, %v1769
  %v1801 = vadd.f32 %v1800, %v1770
  %v1802 = vadd.f32 %v1801, %v1771
  %v1803 = vadd.f32 %v1802, %v1772
  %v1804 = vadd.f32 %v1803, %v1773
  %v1805 = vadd.f32 %v1804, %v1774
  %v1806 = vadd.f32 %v1805, %v1775
  %v1807 = vadd.f32 %v1806, %v1776
  %v1808 = vadd.f32 %v1807, %v1777
  %v1809 = vadd.f32 %v1808, %v1778
  %v1810 = vadd.f32 %v1809, %v1779
  %v1811 = vadd.f32 %v1810, %v1780
  %v1812 = vadd.f32 %v1811, %v1781
  %v1813 = vadd.f32 %v1812, %v1782
  %v1814 = vadd.f32 %v1813, %v1783
  %v1815 = vadd.f32 %v1814, %v1784
  %v1816 = vadd.f32 %v1815, %v1785
  %v1817 = vadd.f32 %v1816, %v1786
  %v1818 = vadd.f32 %v1817, %v1787
  %v1819 = vadd.f32 %v1818, %v1788
  %v1820 = vadd.f32 %v1819, %v1789
  %v1821 = vadd.f32 %v1820, %v1790
  %v1822 = vadd.f32 %v1821, %v1791
  %v1823 = vadd.f32 %v1822, %v1792
  %v1824 = vadd.f32 %v1823, %v1793
  %v1825 = vadd.f32 %v1824, %v1794
  %v1826 = vadd.f32 %v1825, %v1795
  %v1827 = vadd.f32 %v1826, %v1796
  %v1828 = vadd.f32 %v1827, %v1797
  %v1829 = vadd.f32 %v1828, %v1798
  %v1830 = vadd.f32 %v1829, %v1799
  %v1831 = vrot.slane %v1830, 4
  %v1832 = vadd.f32 %v1830, %v1831
  %v1833 = vrot.slane %v1832, 2
  %v1834 = vadd.f32 %v1832, %v1833
  %v1835 = vrot.slane %v1834, 1
  %v1836 = vadd.f32 %v1834, %v1835
  %v1837 = vmul.f32 %v1836, 0.055555556
  %v1838 = vmul.f32 %v1767, %v1767
  %v1839 = vsub.f32 %v1837, %v1838
  %v1840 = vmax.f32 %v1839, 0.0
  %v1841 = vadd.f32 %v1840, 1e-05
  %v1842 = vrsqrt.pop %v1841
  %v1843 = vmul.f32 %v1842, %v1163
  %v1844 = vmul.f32 %v1767, %v1843
  %v1846 = vrot.slane %v1844, 7
  %v1848 = vsub.f32 %v1163, %v1846
  %v1849 = vlaneseq
  %v1850 = vshrl.u32 %v1849, 7
  %v1851 = vsub.s32 1, %v1850
  %v1852 = vrot.slane %v1843, %v1851
  %v1853 = vmul.f32 %v1698, %v1852
  %v1854 = vmul.f32 %v1699, %v1852
  %v1855 = vmul.f32 %v1700, %v1852
  %v1856 = vmul.f32 %v1701, %v1852
  %v1857 = vmul.f32 %v1702, %v1852
  %v1858 = vmul.f32 %v1703, %v1852
  %v1859 = vmul.f32 %v1704, %v1852
  %v1860 = vmul.f32 %v1705, %v1852
  %v1861 = vmul.f32 %v1706, %v1852
  %v1862 = vmul.f32 %v1707, %v1852
  %v1863 = vmul.f32 %v1708, %v1852
  %v1864 = vmul.f32 %v1709, %v1852
  %v1865 = vmul.f32 %v1710, %v1852
  %v1866 = vmul.f32 %v1711, %v1852
  %v1867 = vmul.f32 %v1712, %v1852
  %v1868 = vmul.f32 %v1713, %v1852
  %v1869 = vmul.f32 %v1714, %v1852
  %v1870 = vmul.f32 %v1715, %v1852
  %v1871 = vmul.f32 %v1716, %v1852
  %v1872 = vmul.f32 %v1717, %v1852
  %v1873 = vmul.f32 %v1718, %v1852
  %v1874 = vmul.f32 %v1719, %v1852
  %v1875 = vmul.f32 %v1720, %v1852
  %v1876 = vmul.f32 %v1721, %v1852
  %v1877 = vmul.f32 %v1722, %v1852
  %v1878 = vmul.f32 %v1723, %v1852
  %v1879 = vmul.f32 %v1724, %v1852
  %v1880 = vmul.f32 %v1725, %v1852
  %v1881 = vmul.f32 %v1726, %v1852
  %v1882 = vmul.f32 %v1727, %v1852
  %v1883 = vmul.f32 %v1728, %v1852
  %v1884 = vmul.f32 %v1729, %v1852
  %v1885 = vlaneseq
  %v1886 = vshrl.u32 %v1885, 7
  %v1887 = vsub.s32 2, %v1886
  %v1888 = vrot.slane %v1848, %v1887
  %v1889 = vadd.f32 %v1853, %v1888
  %v1890 = vadd.f32 %v1854, %v1888
  %v1891 = vadd.f32 %v1855, %v1888
  %v1892 = vadd.f32 %v1856, %v1888
  %v1893 = vadd.f32 %v1857, %v1888
  %v1894 = vadd.f32 %v1858, %v1888
  %v1895 = vadd.f32 %v1859, %v1888
  %v1896 = vadd.f32 %v1860, %v1888
  %v1897 = vadd.f32 %v1861, %v1888
  %v1898 = vadd.f32 %v1862, %v1888
  %v1899 = vadd.f32 %v1863, %v1888
  %v1900 = vadd.f32 %v1864, %v1888
  %v1901 = vadd.f32 %v1865, %v1888
  %v1902 = vadd.f32 %v1866, %v1888
  %v1903 = vadd.f32 %v1867, %v1888
  %v1904 = vadd.f32 %v1868, %v1888
  %v1905 = vadd.f32 %v1869, %v1888
  %v1906 = vadd.f32 %v1870, %v1888
  %v1907 = vadd.f32 %v1871, %v1888
  %v1908 = vadd.f32 %v1872, %v1888
  %v1909 = vadd.f32 %v1873, %v1888
  %v1910 = vadd.f32 %v1874, %v1888
  %v1911 = vadd.f32 %v1875, %v1888
  %v1912 = vadd.f32 %v1876, %v1888
  %v1913 = vadd.f32 %v1877, %v1888
  %v1914 = vadd.f32 %v1878, %v1888
  %v1915 = vadd.f32 %v1879, %v1888
  %v1916 = vadd.f32 %v1880, %v1888
  %v1917 = vadd.f32 %v1881, %v1888
  %v1918 = vadd.f32 %v1882, %v1888
  %v1919 = vadd.f32 %v1883, %v1888
  %v1920 = vadd.f32 %v1884, %v1888
  %s1921 = scalar_lea.vmem %s2, 128
  %v1922 = vld [vmem:[%s1921] sm:$0xf]
  %v1923 = vld [vmem:[%s1921 + $0x4] sm:$0xf]
  %v1924 = vld [vmem:[%s1921 + $0x8] sm:$0xf]
  %v1925 = vld [vmem:[%s1921 + $0xc] sm:$0xf]
  %v1926 = vld [vmem:[%s1921 + $0x10] sm:$0xf]
  %v1927 = vld [vmem:[%s1921 + $0x14] sm:$0xf]
  %v1928 = vld [vmem:[%s1921 + $0x18] sm:$0xf]
  %v1929 = vld [vmem:[%s1921 + $0x1c] sm:$0xf]
  %v1930 = vld [vmem:[%s1921 + $0x20] sm:$0xf]
  %v1931 = vld [vmem:[%s1921 + $0x24] sm:$0xf]
  %v1932 = vld [vmem:[%s1921 + $0x28] sm:$0xf]
  %v1933 = vld [vmem:[%s1921 + $0x2c] sm:$0xf]
  %v1934 = vld [vmem:[%s1921 + $0x30] sm:$0xf]
  %v1935 = vld [vmem:[%s1921 + $0x34] sm:$0xf]
  %v1936 = vld [vmem:[%s1921 + $0x38] sm:$0xf]
  %v1937 = vld [vmem:[%s1921 + $0x3c] sm:$0xf]
  %s1938 = scalar_lea.vmem %s3, 16
  %v1939 = vld [vmem:[%s1938] sm:$0xff]
  %v1940 = vpack.c.bf16 %v1890, %v1889
  %v1941 = vpack.c.bf16 %v1892, %v1891
  %v1942 = vpack.c.bf16 %v1894, %v1893
  %v1943 = vpack.c.bf16 %v1896, %v1895
  %v1944 = vpack.c.bf16 %v1898, %v1897
  %v1945 = vpack.c.bf16 %v1900, %v1899
  %v1946 = vpack.c.bf16 %v1902, %v1901
  %v1947 = vpack.c.bf16 %v1904, %v1903
  %v1948 = vpack.c.bf16 %v1906, %v1905
  %v1949 = vpack.c.bf16 %v1908, %v1907
  %v1950 = vpack.c.bf16 %v1910, %v1909
  %v1951 = vpack.c.bf16 %v1912, %v1911
  %v1952 = vpack.c.bf16 %v1914, %v1913
  %v1953 = vpack.c.bf16 %v1916, %v1915
  %v1954 = vpack.c.bf16 %v1918, %v1917
  %v1955 = vpack.c.bf16 %v1920, %v1919
  %v1972 = vunpack.c.l.b16 %v1922
  %v1973 = vunpack.c.l.b16 %v1923
  %v1974 = vunpack.c.l.b16 %v1924
  %v1975 = vunpack.c.l.b16 %v1925
  %v1976 = vunpack.c.l.b16 %v1926
  %v1977 = vunpack.c.l.b16 %v1927
  %v1978 = vunpack.c.l.b16 %v1928
  %v1979 = vunpack.c.l.b16 %v1929
  %v1980 = vunpack.c.l.b16 %v1930
  %v1981 = vunpack.c.l.b16 %v1931
  %v1982 = vunpack.c.l.b16 %v1932
  %v1983 = vunpack.c.l.b16 %v1933
  %v1984 = vunpack.c.l.b16 %v1934
  %v1985 = vunpack.c.l.b16 %v1935
  %v1986 = vunpack.c.l.b16 %v1936
  %v1987 = vunpack.c.l.b16 %v1937
  %v1988 = vpack.c.b16 %v1973, %v1972
  %v1989 = vpack.c.b16 %v1975, %v1974
  %v1990 = vpack.c.b16 %v1977, %v1976
  %v1991 = vpack.c.b16 %v1979, %v1978
  %v1992 = vpack.c.b16 %v1981, %v1980
  %v1993 = vpack.c.b16 %v1983, %v1982
  %v1994 = vpack.c.b16 %v1985, %v1984
  %v1995 = vpack.c.b16 %v1987, %v1986
  %2004 = vmatprep.subr.bf16.mxu0 0
  %2005 = vmatpush1.bf16.msra.mxu0 %v1995
  %2006 = vmatprep.subr.bf16.mxu0 0
  %2007 = vmatpush1.bf16.msra.mxu0 %v1994
  %2008 = vmatprep.subr.bf16.mxu0 0
  %2009 = vmatpush1.bf16.msra.mxu0 %v1993
  %2010 = vmatprep.subr.bf16.mxu0 0
  %2011 = vmatpush1.bf16.msra.mxu0 %v1992
  %2012 = vmatprep.subr.bf16.mxu0 0
  %2013 = vmatpush1.bf16.msra.mxu0 %v1991
  %2014 = vmatprep.subr.bf16.mxu0 0
  %2015 = vmatpush1.bf16.msra.mxu0 %v1990
  %2016 = vmatprep.subr.bf16.mxu0 0
  %2017 = vmatpush1.bf16.msra.mxu0 %v1989
  %2018 = vmatprep.subr.bf16.mxu0 0
  %2019 = vmatpush1.bf16.msra.mxu0 %v1988
  %2020 = vmatprep.subr.bf16.mxu0 0
  %2021 = vmatpush2.bf16.msra.mxu0 0
  %2022 = vmatprep.subr.bf16.mxu0 0
  %2023 = vmatpush2.bf16.msra.mxu0 0
  %2024 = vmatprep.subr.bf16.mxu0 0
  %2025 = vmatpush2.bf16.msra.mxu0 0
  %2026 = vmatprep.subr.bf16.mxu0 0
  %2027 = vmatpush2.bf16.msra.mxu0 0
  %2028 = vmatprep.subr.bf16.mxu0 0
  %2029 = vmatpush2.bf16.msra.mxu0 0
  %2030 = vmatprep.subr.bf16.mxu0 0
  %2031 = vmatpush2.bf16.msra.mxu0 0
  %2032 = vmatprep.subr.bf16.mxu0 0
  %2033 = vmatpush2.bf16.msra.mxu0 0
  %2034 = vmatprep.subr.bf16.mxu0 0
  %2035 = vmatpush2.bf16.msra.mxu0 0
  %2036 = vmatprep.mubr.bf16.mxu0 0
  %2037 = vmatmul.mubr.bf16.gmra.mxu0 %v1940
  %v2038 = vpop.f32.mrf.mxu0
  %v2039 = vadd.f32 0.0, %v2038
  %v2040 = vpop.f32.mrf.mxu0
  %v2041 = vpop.f32.mrf.mxu0
  %v2042 = vadd.f32 0.0, %v2041
  %v2043 = vpop.f32.mrf.mxu0
  %2044 = vmatprep.mubr.bf16.mxu0 0
  %2045 = vmatmul.mubr.bf16.gmra.mxu0 %v1941
  %v2046 = vpop.f32.mrf.mxu0
  %v2047 = vadd.f32 0.0, %v2046
  %v2048 = vpop.f32.mrf.mxu0
  %v2049 = vpop.f32.mrf.mxu0
  %v2050 = vadd.f32 0.0, %v2049
  %v2051 = vpop.f32.mrf.mxu0
  %2052 = vmatprep.mubr.bf16.mxu0 0
  %2053 = vmatmul.mubr.bf16.gmra.mxu0 %v1942
  %v2054 = vpop.f32.mrf.mxu0
  %v2055 = vadd.f32 0.0, %v2054
  %v2056 = vpop.f32.mrf.mxu0
  %v2057 = vpop.f32.mrf.mxu0
  %v2058 = vadd.f32 0.0, %v2057
  %v2059 = vpop.f32.mrf.mxu0
  %2060 = vmatprep.mubr.bf16.mxu0 0
  %2061 = vmatmul.mubr.bf16.gmra.mxu0 %v1943
  %v2062 = vpop.f32.mrf.mxu0
  %v2063 = vadd.f32 0.0, %v2062
  %v2064 = vpop.f32.mrf.mxu0
  %v2065 = vpop.f32.mrf.mxu0
  %v2066 = vadd.f32 0.0, %v2065
  %v2067 = vpop.f32.mrf.mxu0
  %2068 = vmatprep.mubr.bf16.mxu0 0
  %2069 = vmatmul.mubr.bf16.gmra.mxu0 %v1944
  %v2070 = vpop.f32.mrf.mxu0
  %v2071 = vadd.f32 0.0, %v2070
  %v2072 = vpop.f32.mrf.mxu0
  %v2073 = vpop.f32.mrf.mxu0
  %v2074 = vadd.f32 0.0, %v2073
  %v2075 = vpop.f32.mrf.mxu0
  %2076 = vmatprep.mubr.bf16.mxu0 0
  %2077 = vmatmul.mubr.bf16.gmra.mxu0 %v1945
  %v2078 = vpop.f32.mrf.mxu0
  %v2079 = vadd.f32 0.0, %v2078
  %v2080 = vpop.f32.mrf.mxu0
  %v2081 = vpop.f32.mrf.mxu0
  %v2082 = vadd.f32 0.0, %v2081
  %v2083 = vpop.f32.mrf.mxu0
  %2084 = vmatprep.mubr.bf16.mxu0 0
  %2085 = vmatmul.mubr.bf16.gmra.mxu0 %v1946
  %v2086 = vpop.f32.mrf.mxu0
  %v2087 = vadd.f32 0.0, %v2086
  %v2088 = vpop.f32.mrf.mxu0
  %v2089 = vpop.f32.mrf.mxu0
  %v2090 = vadd.f32 0.0, %v2089
  %v2091 = vpop.f32.mrf.mxu0
  %2092 = vmatprep.mubr.bf16.mxu0 0
  %2093 = vmatmul.mubr.bf16.gmra.mxu0 %v1947
  %v2094 = vpop.f32.mrf.mxu0
  %v2095 = vadd.f32 0.0, %v2094
  %v2096 = vpop.f32.mrf.mxu0
  %v2097 = vpop.f32.mrf.mxu0
  %v2098 = vadd.f32 0.0, %v2097
  %v2099 = vpop.f32.mrf.mxu0
  %2100 = vmatprep.mubr.bf16.mxu0 0
  %2101 = vmatmul.mubr.bf16.gmra.mxu0 %v1948
  %v2102 = vpop.f32.mrf.mxu0
  %v2103 = vadd.f32 0.0, %v2102
  %v2104 = vpop.f32.mrf.mxu0
  %v2105 = vpop.f32.mrf.mxu0
  %v2106 = vadd.f32 0.0, %v2105
  %v2107 = vpop.f32.mrf.mxu0
  %2108 = vmatprep.mubr.bf16.mxu0 0
  %2109 = vmatmul.mubr.bf16.gmra.mxu0 %v1949
  %v2110 = vpop.f32.mrf.mxu0
  %v2111 = vadd.f32 0.0, %v2110
  %v2112 = vpop.f32.mrf.mxu0
  %v2113 = vpop.f32.mrf.mxu0
  %v2114 = vadd.f32 0.0, %v2113
  %v2115 = vpop.f32.mrf.mxu0
  %2116 = vmatprep.mubr.bf16.mxu0 0
  %2117 = vmatmul.mubr.bf16.gmra.mxu0 %v1950
  %v2118 = vpop.f32.mrf.mxu0
  %v2119 = vadd.f32 0.0, %v2118
  %v2120 = vpop.f32.mrf.mxu0
  %v2121 = vpop.f32.mrf.mxu0
  %v2122 = vadd.f32 0.0, %v2121
  %v2123 = vpop.f32.mrf.mxu0
  %2124 = vmatprep.mubr.bf16.mxu0 0
  %2125 = vmatmul.mubr.bf16.gmra.mxu0 %v1951
  %v2126 = vpop.f32.mrf.mxu0
  %v2127 = vadd.f32 0.0, %v2126
  %v2128 = vpop.f32.mrf.mxu0
  %v2129 = vpop.f32.mrf.mxu0
  %v2130 = vadd.f32 0.0, %v2129
  %v2131 = vpop.f32.mrf.mxu0
  %2132 = vmatprep.mubr.bf16.mxu0 0
  %2133 = vmatmul.mubr.bf16.gmra.mxu0 %v1952
  %v2134 = vpop.f32.mrf.mxu0
  %v2135 = vadd.f32 0.0, %v2134
  %v2136 = vpop.f32.mrf.mxu0
  %v2137 = vpop.f32.mrf.mxu0
  %v2138 = vadd.f32 0.0, %v2137
  %v2139 = vpop.f32.mrf.mxu0
  %2140 = vmatprep.mubr.bf16.mxu0 0
  %2141 = vmatmul.mubr.bf16.gmra.mxu0 %v1953
  %v2142 = vpop.f32.mrf.mxu0
  %v2143 = vadd.f32 0.0, %v2142
  %v2144 = vpop.f32.mrf.mxu0
  %v2145 = vpop.f32.mrf.mxu0
  %v2146 = vadd.f32 0.0, %v2145
  %v2147 = vpop.f32.mrf.mxu0
  %2148 = vmatprep.mubr.bf16.mxu0 0
  %2149 = vmatmul.mubr.bf16.gmra.mxu0 %v1954
  %v2150 = vpop.f32.mrf.mxu0
  %v2151 = vadd.f32 0.0, %v2150
  %v2152 = vpop.f32.mrf.mxu0
  %v2153 = vpop.f32.mrf.mxu0
  %v2154 = vadd.f32 0.0, %v2153
  %v2155 = vpop.f32.mrf.mxu0
  %2156 = vmatprep.mubr.bf16.mxu0 0
  %2157 = vmatmul.mubr.bf16.gmra.mxu0 %v1955
  %v2158 = vpop.f32.mrf.mxu0
  %v2159 = vadd.f32 0.0, %v2158
  %v2160 = vpop.f32.mrf.mxu0
  %v2161 = vpop.f32.mrf.mxu0
  %v2162 = vadd.f32 0.0, %v2161
  %v2163 = vpop.f32.mrf.mxu0
  %2164 = vdwg.mxu0
  %v2165 = vpack.c.bf16 %v2042, %v2039
  %v2166 = vpack.c.bf16 %v2050, %v2047
  %v2167 = vpack.c.bf16 %v2058, %v2055
  %v2168 = vpack.c.bf16 %v2066, %v2063
  %v2169 = vpack.c.bf16 %v2074, %v2071
  %v2170 = vpack.c.bf16 %v2082, %v2079
  %v2171 = vpack.c.bf16 %v2090, %v2087
  %v2172 = vpack.c.bf16 %v2098, %v2095
  %v2173 = vpack.c.bf16 %v2106, %v2103
  %v2174 = vpack.c.bf16 %v2114, %v2111
  %v2175 = vpack.c.bf16 %v2122, %v2119
  %v2176 = vpack.c.bf16 %v2130, %v2127
  %v2177 = vpack.c.bf16 %v2138, %v2135
  %v2178 = vpack.c.bf16 %v2146, %v2143
  %v2179 = vpack.c.bf16 %v2154, %v2151
  %v2180 = vpack.c.bf16 %v2162, %v2159
  %v2181 = vlaneseq
  %v2182 = vshrl.u32 %v2181, 7
  %v2183 = vsub.s32 0, %v2182
  %v2184 = vrot.slane %v1939, %v2183
  %2185 = vmatprep.subr.bf16.mxu0 0
  %2186 = vmatpush1.bf16.msra.mxu0 %v2172
  %2187 = vmatprep.subr.bf16.mxu0 0
  %2188 = vmatpush1.bf16.msra.mxu0 %v2171
  %2189 = vmatprep.subr.bf16.mxu0 0
  %2190 = vmatpush1.bf16.msra.mxu0 %v2170
  %2191 = vmatprep.subr.bf16.mxu0 0
  %2192 = vmatpush1.bf16.msra.mxu0 %v2169
  %2193 = vmatprep.subr.bf16.mxu0 0
  %2194 = vmatpush1.bf16.msra.mxu0 %v2168
  %2195 = vmatprep.subr.bf16.mxu0 0
  %2196 = vmatpush1.bf16.msra.mxu0 %v2167
  %2197 = vmatprep.subr.bf16.mxu0 0
  %2198 = vmatpush1.bf16.msra.mxu0 %v2166
  %2199 = vmatprep.subr.bf16.mxu0 0
  %2200 = vmatpush1.bf16.msra.mxu0 %v2165
  %2201 = vmatprep.subr.bf16.mxu0 0
  %2202 = vmatpush2.bf16.msra.mxu0 %v2180
  %2203 = vmatprep.subr.bf16.mxu0 0
  %2204 = vmatpush2.bf16.msra.mxu0 %v2179
  %2205 = vmatprep.subr.bf16.mxu0 0
  %2206 = vmatpush2.bf16.msra.mxu0 %v2178
  %2207 = vmatprep.subr.bf16.mxu0 0
  %2208 = vmatpush2.bf16.msra.mxu0 %v2177
  %2209 = vmatprep.subr.bf16.mxu0 0
  %2210 = vmatpush2.bf16.msra.mxu0 %v2176
  %2211 = vmatprep.subr.bf16.mxu0 0
  %2212 = vmatpush2.bf16.msra.mxu0 %v2175
  %2213 = vmatprep.subr.bf16.mxu0 0
  %2214 = vmatpush2.bf16.msra.mxu0 %v2174
  %2215 = vmatprep.subr.bf16.mxu0 0
  %2216 = vmatpush2.bf16.msra.mxu0 %v2173
  %2217 = vmatprep.mubr.bf16.mxu0 %v570
  %2218 = vmatmul.mubr.bf16.gmra.mxu0 %v569
  %v2219 = vpop.f32.mrf.mxu0
  %v2220 = vadd.f32 %v2184, %v2219
  %v2221 = vpop.f32.mrf.mxu0
  %v2222 = vpop.f32.mrf.mxu0
  %v2223 = vadd.f32 %v2184, %v2222
  %v2224 = vpop.f32.mrf.mxu0
  %2225 = vmatprep.mubr.bf16.mxu0 %v572
  %2226 = vmatmul.mubr.bf16.gmra.mxu0 %v571
  %v2227 = vpop.f32.mrf.mxu0
  %v2228 = vadd.f32 %v2184, %v2227
  %v2229 = vpop.f32.mrf.mxu0
  %v2230 = vpop.f32.mrf.mxu0
  %v2231 = vadd.f32 %v2184, %v2230
  %v2232 = vpop.f32.mrf.mxu0
  %2233 = vmatprep.mubr.bf16.mxu0 %v574
  %2234 = vmatmul.mubr.bf16.gmra.mxu0 %v573
  %v2235 = vpop.f32.mrf.mxu0
  %v2236 = vadd.f32 %v2184, %v2235
  %v2237 = vpop.f32.mrf.mxu0
  %v2238 = vpop.f32.mrf.mxu0
  %v2239 = vadd.f32 %v2184, %v2238
  %v2240 = vpop.f32.mrf.mxu0
  %2241 = vmatprep.mubr.bf16.mxu0 %v576
  %2242 = vmatmul.mubr.bf16.gmra.mxu0 %v575
  %v2243 = vpop.f32.mrf.mxu0
  %v2244 = vadd.f32 %v2184, %v2243
  %v2245 = vpop.f32.mrf.mxu0
  %v2246 = vpop.f32.mrf.mxu0
  %v2247 = vadd.f32 %v2184, %v2246
  %v2248 = vpop.f32.mrf.mxu0
  %2249 = vmatprep.mubr.bf16.mxu0 %v578
  %2250 = vmatmul.mubr.bf16.gmra.mxu0 %v577
  %v2251 = vpop.f32.mrf.mxu0
  %v2252 = vadd.f32 %v2184, %v2251
  %v2253 = vpop.f32.mrf.mxu0
  %v2254 = vpop.f32.mrf.mxu0
  %v2255 = vadd.f32 %v2184, %v2254
  %v2256 = vpop.f32.mrf.mxu0
  %2257 = vmatprep.mubr.bf16.mxu0 %v580
  %2258 = vmatmul.mubr.bf16.gmra.mxu0 %v579
  %v2259 = vpop.f32.mrf.mxu0
  %v2260 = vadd.f32 %v2184, %v2259
  %v2261 = vpop.f32.mrf.mxu0
  %v2262 = vpop.f32.mrf.mxu0
  %v2263 = vadd.f32 %v2184, %v2262
  %v2264 = vpop.f32.mrf.mxu0
  %2265 = vmatprep.mubr.bf16.mxu0 %v582
  %2266 = vmatmul.mubr.bf16.gmra.mxu0 %v581
  %v2267 = vpop.f32.mrf.mxu0
  %v2268 = vadd.f32 %v2184, %v2267
  %v2269 = vpop.f32.mrf.mxu0
  %v2270 = vpop.f32.mrf.mxu0
  %v2271 = vadd.f32 %v2184, %v2270
  %v2272 = vpop.f32.mrf.mxu0
  %2273 = vmatprep.mubr.bf16.mxu0 %v584
  %2274 = vmatmul.mubr.bf16.gmra.mxu0 %v583
  %v2275 = vpop.f32.mrf.mxu0
  %v2276 = vadd.f32 %v2184, %v2275
  %v2277 = vpop.f32.mrf.mxu0
  %v2278 = vpop.f32.mrf.mxu0
  %v2279 = vadd.f32 %v2184, %v2278
  %v2280 = vpop.f32.mrf.mxu0
  %2281 = vmatprep.mubr.bf16.mxu0 %v586
  %2282 = vmatmul.mubr.bf16.gmra.mxu0 %v585
  %v2283 = vpop.f32.mrf.mxu0
  %v2284 = vadd.f32 %v2184, %v2283
  %v2285 = vpop.f32.mrf.mxu0
  %v2286 = vpop.f32.mrf.mxu0
  %v2287 = vadd.f32 %v2184, %v2286
  %v2288 = vpop.f32.mrf.mxu0
  %2289 = vmatprep.mubr.bf16.mxu0 %v588
  %2290 = vmatmul.mubr.bf16.gmra.mxu0 %v587
  %v2291 = vpop.f32.mrf.mxu0
  %v2292 = vadd.f32 %v2184, %v2291
  %v2293 = vpop.f32.mrf.mxu0
  %v2294 = vpop.f32.mrf.mxu0
  %v2295 = vadd.f32 %v2184, %v2294
  %v2296 = vpop.f32.mrf.mxu0
  %2297 = vmatprep.mubr.bf16.mxu0 %v590
  %2298 = vmatmul.mubr.bf16.gmra.mxu0 %v589
  %v2299 = vpop.f32.mrf.mxu0
  %v2300 = vadd.f32 %v2184, %v2299
  %v2301 = vpop.f32.mrf.mxu0
  %v2302 = vpop.f32.mrf.mxu0
  %v2303 = vadd.f32 %v2184, %v2302
  %v2304 = vpop.f32.mrf.mxu0
  %2305 = vmatprep.mubr.bf16.mxu0 %v592
  %2306 = vmatmul.mubr.bf16.gmra.mxu0 %v591
  %v2307 = vpop.f32.mrf.mxu0
  %v2308 = vadd.f32 %v2184, %v2307
  %v2309 = vpop.f32.mrf.mxu0
  %v2310 = vpop.f32.mrf.mxu0
  %v2311 = vadd.f32 %v2184, %v2310
  %v2312 = vpop.f32.mrf.mxu0
  %2313 = vmatprep.mubr.bf16.mxu0 %v594
  %2314 = vmatmul.mubr.bf16.gmra.mxu0 %v593
  %v2315 = vpop.f32.mrf.mxu0
  %v2316 = vadd.f32 %v2184, %v2315
  %v2317 = vpop.f32.mrf.mxu0
  %v2318 = vpop.f32.mrf.mxu0
  %v2319 = vadd.f32 %v2184, %v2318
  %v2320 = vpop.f32.mrf.mxu0
  %2321 = vmatprep.mubr.bf16.mxu0 %v596
  %2322 = vmatmul.mubr.bf16.gmra.mxu0 %v595
  %v2323 = vpop.f32.mrf.mxu0
  %v2324 = vadd.f32 %v2184, %v2323
  %v2325 = vpop.f32.mrf.mxu0
  %v2326 = vpop.f32.mrf.mxu0
  %v2327 = vadd.f32 %v2184, %v2326
  %v2328 = vpop.f32.mrf.mxu0
  %2329 = vmatprep.mubr.bf16.mxu0 %v598
  %2330 = vmatmul.mubr.bf16.gmra.mxu0 %v597
  %v2331 = vpop.f32.mrf.mxu0
  %v2332 = vadd.f32 %v2184, %v2331
  %v2333 = vpop.f32.mrf.mxu0
  %v2334 = vpop.f32.mrf.mxu0
  %v2335 = vadd.f32 %v2184, %v2334
  %v2336 = vpop.f32.mrf.mxu0
  %2337 = vmatprep.mubr.bf16.mxu0 %v600
  %2338 = vmatmul.mubr.bf16.gmra.mxu0 %v599
  %v2339 = vpop.f32.mrf.mxu0
  %v2340 = vadd.f32 %v2184, %v2339
  %v2341 = vpop.f32.mrf.mxu0
  %v2342 = vpop.f32.mrf.mxu0
  %v2343 = vadd.f32 %v2184, %v2342
  %v2344 = vpop.f32.mrf.mxu0
  %2345 = vdwg.mxu0
  %v2346 = vmul.f32 %v2220, %v115
  %v2347 = vmul.f32 %v2223, %v116
  %v2348 = vmul.f32 %v2228, %v117
  %v2349 = vmul.f32 %v2231, %v118
  %v2350 = vmul.f32 %v2236, %v119
  %v2351 = vmul.f32 %v2239, %v120
  %v2352 = vmul.f32 %v2244, %v121
  %v2353 = vmul.f32 %v2247, %v122
  %v2354 = vmul.f32 %v2252, %v123
  %v2355 = vmul.f32 %v2255, %v124
  %v2356 = vmul.f32 %v2260, %v125
  %v2357 = vmul.f32 %v2263, %v126
  %v2358 = vmul.f32 %v2268, %v127
  %v2359 = vmul.f32 %v2271, %v128
  %v2360 = vmul.f32 %v2276, %v129
  %v2361 = vmul.f32 %v2279, %v130
  %v2362 = vmul.f32 %v2284, %v131
  %v2363 = vmul.f32 %v2287, %v132
  %v2364 = vmul.f32 %v2292, %v133
  %v2365 = vmul.f32 %v2295, %v134
  %v2366 = vmul.f32 %v2300, %v135
  %v2367 = vmul.f32 %v2303, %v136
  %v2368 = vmul.f32 %v2308, %v137
  %v2369 = vmul.f32 %v2311, %v138
  %v2370 = vmul.f32 %v2316, %v139
  %v2371 = vmul.f32 %v2319, %v140
  %v2372 = vmul.f32 %v2324, %v141
  %v2373 = vmul.f32 %v2327, %v142
  %v2374 = vmul.f32 %v2332, %v143
  %v2375 = vmul.f32 %v2335, %v144
  %v2376 = vmul.f32 %v2340, %v145
  %v2377 = vmul.f32 %v2343, %v146
  %2378 = vadd.xlane.f32.xlu0 %v2346
  %v2379 = vpop.xlane.xlu0 %2378
  %2380 = vadd.xlane.f32.xlu0 %v2347
  %v2381 = vpop.xlane.xlu0 %2380
  %2382 = vadd.xlane.f32.xlu0 %v2348
  %v2383 = vpop.xlane.xlu0 %2382
  %2384 = vadd.xlane.f32.xlu0 %v2349
  %v2385 = vpop.xlane.xlu0 %2384
  %2386 = vadd.xlane.f32.xlu0 %v2350
  %v2387 = vpop.xlane.xlu0 %2386
  %2388 = vadd.xlane.f32.xlu0 %v2351
  %v2389 = vpop.xlane.xlu0 %2388
  %2390 = vadd.xlane.f32.xlu0 %v2352
  %v2391 = vpop.xlane.xlu0 %2390
  %2392 = vadd.xlane.f32.xlu0 %v2353
  %v2393 = vpop.xlane.xlu0 %2392
  %2394 = vadd.xlane.f32.xlu0 %v2354
  %v2395 = vpop.xlane.xlu0 %2394
  %2396 = vadd.xlane.f32.xlu0 %v2355
  %v2397 = vpop.xlane.xlu0 %2396
  %2398 = vadd.xlane.f32.xlu0 %v2356
  %v2399 = vpop.xlane.xlu0 %2398
  %2400 = vadd.xlane.f32.xlu0 %v2357
  %v2401 = vpop.xlane.xlu0 %2400
  %2402 = vadd.xlane.f32.xlu0 %v2358
  %v2403 = vpop.xlane.xlu0 %2402
  %2404 = vadd.xlane.f32.xlu0 %v2359
  %v2405 = vpop.xlane.xlu0 %2404
  %2406 = vadd.xlane.f32.xlu0 %v2360
  %v2407 = vpop.xlane.xlu0 %2406
  %2408 = vadd.xlane.f32.xlu0 %v2361
  %v2409 = vpop.xlane.xlu0 %2408
  %2410 = vadd.xlane.f32.xlu0 %v2362
  %v2411 = vpop.xlane.xlu0 %2410
  %2412 = vadd.xlane.f32.xlu0 %v2363
  %v2413 = vpop.xlane.xlu0 %2412
  %2414 = vadd.xlane.f32.xlu0 %v2364
  %v2415 = vpop.xlane.xlu0 %2414
  %2416 = vadd.xlane.f32.xlu0 %v2365
  %v2417 = vpop.xlane.xlu0 %2416
  %2418 = vadd.xlane.f32.xlu0 %v2366
  %v2419 = vpop.xlane.xlu0 %2418
  %2420 = vadd.xlane.f32.xlu0 %v2367
  %v2421 = vpop.xlane.xlu0 %2420
  %2422 = vadd.xlane.f32.xlu0 %v2368
  %v2423 = vpop.xlane.xlu0 %2422
  %2424 = vadd.xlane.f32.xlu0 %v2369
  %v2425 = vpop.xlane.xlu0 %2424
  %2426 = vadd.xlane.f32.xlu0 %v2370
  %v2427 = vpop.xlane.xlu0 %2426
  %2428 = vadd.xlane.f32.xlu0 %v2371
  %v2429 = vpop.xlane.xlu0 %2428
  %2430 = vadd.xlane.f32.xlu0 %v2372
  %v2431 = vpop.xlane.xlu0 %2430
  %2432 = vadd.xlane.f32.xlu0 %v2373
  %v2433 = vpop.xlane.xlu0 %2432
  %2434 = vadd.xlane.f32.xlu0 %v2374
  %v2435 = vpop.xlane.xlu0 %2434
  %2436 = vadd.xlane.f32.xlu0 %v2375
  %v2437 = vpop.xlane.xlu0 %2436
  %2438 = vadd.xlane.f32.xlu0 %v2376
  %v2439 = vpop.xlane.xlu0 %2438
  %2440 = vadd.xlane.f32.xlu0 %v2377
  %v2441 = vpop.xlane.xlu0 %2440
  %v2442 = vmul.f32 %v2379, 0.03125
  %v2443 = vmul.f32 %v2381, 0.03125
  %v2444 = vmul.f32 %v2383, 0.03125
  %v2445 = vmul.f32 %v2385, 0.03125
  %v2446 = vmul.f32 %v2387, 0.03125
  %v2447 = vmul.f32 %v2389, 0.03125
  %v2448 = vmul.f32 %v2391, 0.03125
  %v2449 = vmul.f32 %v2393, 0.03125
  %v2450 = vmul.f32 %v2395, 0.03125
  %v2451 = vmul.f32 %v2397, 0.03125
  %v2452 = vmul.f32 %v2399, 0.03125
  %v2453 = vmul.f32 %v2401, 0.03125
  %v2454 = vmul.f32 %v2403, 0.03125
  %v2455 = vmul.f32 %v2405, 0.03125
  %v2456 = vmul.f32 %v2407, 0.03125
  %v2457 = vmul.f32 %v2409, 0.03125
  %v2458 = vmul.f32 %v2411, 0.03125
  %v2459 = vmul.f32 %v2413, 0.03125
  %v2460 = vmul.f32 %v2415, 0.03125
  %v2461 = vmul.f32 %v2417, 0.03125
  %v2462 = vmul.f32 %v2419, 0.03125
  %v2463 = vmul.f32 %v2421, 0.03125
  %v2464 = vmul.f32 %v2423, 0.03125
  %v2465 = vmul.f32 %v2425, 0.03125
  %v2466 = vmul.f32 %v2427, 0.03125
  %v2467 = vmul.f32 %v2429, 0.03125
  %v2468 = vmul.f32 %v2431, 0.03125
  %v2469 = vmul.f32 %v2433, 0.03125
  %v2470 = vmul.f32 %v2435, 0.03125
  %v2471 = vmul.f32 %v2437, 0.03125
  %v2472 = vmul.f32 %v2439, 0.03125
  %v2473 = vmul.f32 %v2441, 0.03125
  %v2474 = vsub.f32 %v2346, %v2442
  %v2475 = vsub.f32 %v2347, %v2443
  %v2476 = vsub.f32 %v2348, %v2444
  %v2477 = vsub.f32 %v2349, %v2445
  %v2478 = vsub.f32 %v2350, %v2446
  %v2479 = vsub.f32 %v2351, %v2447
  %v2480 = vsub.f32 %v2352, %v2448
  %v2481 = vsub.f32 %v2353, %v2449
  %v2482 = vsub.f32 %v2354, %v2450
  %v2483 = vsub.f32 %v2355, %v2451
  %v2484 = vsub.f32 %v2356, %v2452
  %v2485 = vsub.f32 %v2357, %v2453
  %v2486 = vsub.f32 %v2358, %v2454
  %v2487 = vsub.f32 %v2359, %v2455
  %v2488 = vsub.f32 %v2360, %v2456
  %v2489 = vsub.f32 %v2361, %v2457
  %v2490 = vsub.f32 %v2362, %v2458
  %v2491 = vsub.f32 %v2363, %v2459
  %v2492 = vsub.f32 %v2364, %v2460
  %v2493 = vsub.f32 %v2365, %v2461
  %v2494 = vsub.f32 %v2366, %v2462
  %v2495 = vsub.f32 %v2367, %v2463
  %v2496 = vsub.f32 %v2368, %v2464
  %v2497 = vsub.f32 %v2369, %v2465
  %v2498 = vsub.f32 %v2370, %v2466
  %v2499 = vsub.f32 %v2371, %v2467
  %v2500 = vsub.f32 %v2372, %v2468
  %v2501 = vsub.f32 %v2373, %v2469
  %v2502 = vsub.f32 %v2374, %v2470
  %v2503 = vsub.f32 %v2375, %v2471
  %v2504 = vsub.f32 %v2376, %v2472
  %v2505 = vsub.f32 %v2377, %v2473
  %v2506 = vadd.f32 %v2474, %v2475
  %v2507 = vadd.f32 %v2506, %v2476
  %v2508 = vadd.f32 %v2507, %v2477
  %v2509 = vadd.f32 %v2508, %v2478
  %v2510 = vadd.f32 %v2509, %v2479
  %v2511 = vadd.f32 %v2510, %v2480
  %v2512 = vadd.f32 %v2511, %v2481
  %v2513 = vadd.f32 %v2512, %v2482
  %v2514 = vadd.f32 %v2513, %v2483
  %v2515 = vadd.f32 %v2514, %v2484
  %v2516 = vadd.f32 %v2515, %v2485
  %v2517 = vadd.f32 %v2516, %v2486
  %v2518 = vadd.f32 %v2517, %v2487
  %v2519 = vadd.f32 %v2518, %v2488
  %v2520 = vadd.f32 %v2519, %v2489
  %v2521 = vadd.f32 %v2520, %v2490
  %v2522 = vadd.f32 %v2521, %v2491
  %v2523 = vadd.f32 %v2522, %v2492
  %v2524 = vadd.f32 %v2523, %v2493
  %v2525 = vadd.f32 %v2524, %v2494
  %v2526 = vadd.f32 %v2525, %v2495
  %v2527 = vadd.f32 %v2526, %v2496
  %v2528 = vadd.f32 %v2527, %v2497
  %v2529 = vadd.f32 %v2528, %v2498
  %v2530 = vadd.f32 %v2529, %v2499
  %v2531 = vadd.f32 %v2530, %v2500
  %v2532 = vadd.f32 %v2531, %v2501
  %v2533 = vadd.f32 %v2532, %v2502
  %v2534 = vadd.f32 %v2533, %v2503
  %v2535 = vadd.f32 %v2534, %v2504
  %v2536 = vadd.f32 %v2535, %v2505
  %v2537 = vrot.slane %v2536, 4
  %v2538 = vadd.f32 %v2536, %v2537
  %v2539 = vrot.slane %v2538, 2
  %v2540 = vadd.f32 %v2538, %v2539
  %v2541 = vrot.slane %v2540, 1
  %v2542 = vadd.f32 %v2540, %v2541
  %v2543 = vmul.f32 %v2542, 0.055555556
  %v2544 = vmul.f32 %v2474, %v2474
  %v2545 = vmul.f32 %v2475, %v2475
  %v2546 = vmul.f32 %v2476, %v2476
  %v2547 = vmul.f32 %v2477, %v2477
  %v2548 = vmul.f32 %v2478, %v2478
  %v2549 = vmul.f32 %v2479, %v2479
  %v2550 = vmul.f32 %v2480, %v2480
  %v2551 = vmul.f32 %v2481, %v2481
  %v2552 = vmul.f32 %v2482, %v2482
  %v2553 = vmul.f32 %v2483, %v2483
  %v2554 = vmul.f32 %v2484, %v2484
  %v2555 = vmul.f32 %v2485, %v2485
  %v2556 = vmul.f32 %v2486, %v2486
  %v2557 = vmul.f32 %v2487, %v2487
  %v2558 = vmul.f32 %v2488, %v2488
  %v2559 = vmul.f32 %v2489, %v2489
  %v2560 = vmul.f32 %v2490, %v2490
  %v2561 = vmul.f32 %v2491, %v2491
  %v2562 = vmul.f32 %v2492, %v2492
  %v2563 = vmul.f32 %v2493, %v2493
  %v2564 = vmul.f32 %v2494, %v2494
  %v2565 = vmul.f32 %v2495, %v2495
  %v2566 = vmul.f32 %v2496, %v2496
  %v2567 = vmul.f32 %v2497, %v2497
  %v2568 = vmul.f32 %v2498, %v2498
  %v2569 = vmul.f32 %v2499, %v2499
  %v2570 = vmul.f32 %v2500, %v2500
  %v2571 = vmul.f32 %v2501, %v2501
  %v2572 = vmul.f32 %v2502, %v2502
  %v2573 = vmul.f32 %v2503, %v2503
  %v2574 = vmul.f32 %v2504, %v2504
  %v2575 = vmul.f32 %v2505, %v2505
  %v2576 = vadd.f32 %v2544, %v2545
  %v2577 = vadd.f32 %v2576, %v2546
  %v2578 = vadd.f32 %v2577, %v2547
  %v2579 = vadd.f32 %v2578, %v2548
  %v2580 = vadd.f32 %v2579, %v2549
  %v2581 = vadd.f32 %v2580, %v2550
  %v2582 = vadd.f32 %v2581, %v2551
  %v2583 = vadd.f32 %v2582, %v2552
  %v2584 = vadd.f32 %v2583, %v2553
  %v2585 = vadd.f32 %v2584, %v2554
  %v2586 = vadd.f32 %v2585, %v2555
  %v2587 = vadd.f32 %v2586, %v2556
  %v2588 = vadd.f32 %v2587, %v2557
  %v2589 = vadd.f32 %v2588, %v2558
  %v2590 = vadd.f32 %v2589, %v2559
  %v2591 = vadd.f32 %v2590, %v2560
  %v2592 = vadd.f32 %v2591, %v2561
  %v2593 = vadd.f32 %v2592, %v2562
  %v2594 = vadd.f32 %v2593, %v2563
  %v2595 = vadd.f32 %v2594, %v2564
  %v2596 = vadd.f32 %v2595, %v2565
  %v2597 = vadd.f32 %v2596, %v2566
  %v2598 = vadd.f32 %v2597, %v2567
  %v2599 = vadd.f32 %v2598, %v2568
  %v2600 = vadd.f32 %v2599, %v2569
  %v2601 = vadd.f32 %v2600, %v2570
  %v2602 = vadd.f32 %v2601, %v2571
  %v2603 = vadd.f32 %v2602, %v2572
  %v2604 = vadd.f32 %v2603, %v2573
  %v2605 = vadd.f32 %v2604, %v2574
  %v2606 = vadd.f32 %v2605, %v2575
  %v2607 = vrot.slane %v2606, 4
  %v2608 = vadd.f32 %v2606, %v2607
  %v2609 = vrot.slane %v2608, 2
  %v2610 = vadd.f32 %v2608, %v2609
  %v2611 = vrot.slane %v2610, 1
  %v2612 = vadd.f32 %v2610, %v2611
  %v2613 = vmul.f32 %v2612, 0.055555556
  %v2614 = vmul.f32 %v2543, %v2543
  %v2615 = vsub.f32 %v2613, %v2614
  %v2616 = vmax.f32 %v2615, 0.0
  %v2617 = vadd.f32 %v2616, 1e-05
  %v2618 = vrsqrt.pop %v2617
  %v2619 = vmul.f32 %v2618, %v1939
  %v2620 = vmul.f32 %v2543, %v2619
  %v2622 = vrot.slane %v2620, 7
  %v2624 = vsub.f32 %v1939, %v2622
  %v2625 = vlaneseq
  %v2626 = vshrl.u32 %v2625, 7
  %v2627 = vsub.s32 1, %v2626
  %v2628 = vrot.slane %v2619, %v2627
  %v2629 = vmul.f32 %v2474, %v2628
  %v2630 = vmul.f32 %v2475, %v2628
  %v2631 = vmul.f32 %v2476, %v2628
  %v2632 = vmul.f32 %v2477, %v2628
  %v2633 = vmul.f32 %v2478, %v2628
  %v2634 = vmul.f32 %v2479, %v2628
  %v2635 = vmul.f32 %v2480, %v2628
  %v2636 = vmul.f32 %v2481, %v2628
  %v2637 = vmul.f32 %v2482, %v2628
  %v2638 = vmul.f32 %v2483, %v2628
  %v2639 = vmul.f32 %v2484, %v2628
  %v2640 = vmul.f32 %v2485, %v2628
  %v2641 = vmul.f32 %v2486, %v2628
  %v2642 = vmul.f32 %v2487, %v2628
  %v2643 = vmul.f32 %v2488, %v2628
  %v2644 = vmul.f32 %v2489, %v2628
  %v2645 = vmul.f32 %v2490, %v2628
  %v2646 = vmul.f32 %v2491, %v2628
  %v2647 = vmul.f32 %v2492, %v2628
  %v2648 = vmul.f32 %v2493, %v2628
  %v2649 = vmul.f32 %v2494, %v2628
  %v2650 = vmul.f32 %v2495, %v2628
  %v2651 = vmul.f32 %v2496, %v2628
  %v2652 = vmul.f32 %v2497, %v2628
  %v2653 = vmul.f32 %v2498, %v2628
  %v2654 = vmul.f32 %v2499, %v2628
  %v2655 = vmul.f32 %v2500, %v2628
  %v2656 = vmul.f32 %v2501, %v2628
  %v2657 = vmul.f32 %v2502, %v2628
  %v2658 = vmul.f32 %v2503, %v2628
  %v2659 = vmul.f32 %v2504, %v2628
  %v2660 = vmul.f32 %v2505, %v2628
  %v2661 = vlaneseq
  %v2662 = vshrl.u32 %v2661, 7
  %v2663 = vsub.s32 2, %v2662
  %v2664 = vrot.slane %v2624, %v2663
  %v2665 = vadd.f32 %v2629, %v2664
  %v2666 = vadd.f32 %v2630, %v2664
  %v2667 = vadd.f32 %v2631, %v2664
  %v2668 = vadd.f32 %v2632, %v2664
  %v2669 = vadd.f32 %v2633, %v2664
  %v2670 = vadd.f32 %v2634, %v2664
  %v2671 = vadd.f32 %v2635, %v2664
  %v2672 = vadd.f32 %v2636, %v2664
  %v2673 = vadd.f32 %v2637, %v2664
  %v2674 = vadd.f32 %v2638, %v2664
  %v2675 = vadd.f32 %v2639, %v2664
  %v2676 = vadd.f32 %v2640, %v2664
  %v2677 = vadd.f32 %v2641, %v2664
  %v2678 = vadd.f32 %v2642, %v2664
  %v2679 = vadd.f32 %v2643, %v2664
  %v2680 = vadd.f32 %v2644, %v2664
  %v2681 = vadd.f32 %v2645, %v2664
  %v2682 = vadd.f32 %v2646, %v2664
  %v2683 = vadd.f32 %v2647, %v2664
  %v2684 = vadd.f32 %v2648, %v2664
  %v2685 = vadd.f32 %v2649, %v2664
  %v2686 = vadd.f32 %v2650, %v2664
  %v2687 = vadd.f32 %v2651, %v2664
  %v2688 = vadd.f32 %v2652, %v2664
  %v2689 = vadd.f32 %v2653, %v2664
  %v2690 = vadd.f32 %v2654, %v2664
  %v2691 = vadd.f32 %v2655, %v2664
  %v2692 = vadd.f32 %v2656, %v2664
  %v2693 = vadd.f32 %v2657, %v2664
  %v2694 = vadd.f32 %v2658, %v2664
  %v2695 = vadd.f32 %v2659, %v2664
  %v2696 = vadd.f32 %v2660, %v2664
  %2697 = vst [vmem:[%s4] sm:$0xff] %v2665
  %2698 = vst [vmem:[%s4 + $0x8] sm:$0xff] %v2666
  %2699 = vst [vmem:[%s4 + $0x10] sm:$0xff] %v2667
  %2700 = vst [vmem:[%s4 + $0x18] sm:$0xff] %v2668
  %2701 = vst [vmem:[%s4 + $0x20] sm:$0xff] %v2669
  %2702 = vst [vmem:[%s4 + $0x28] sm:$0xff] %v2670
  %2703 = vst [vmem:[%s4 + $0x30] sm:$0xff] %v2671
  %2704 = vst [vmem:[%s4 + $0x38] sm:$0xff] %v2672
  %2705 = vst [vmem:[%s4 + $0x40] sm:$0xff] %v2673
  %2706 = vst [vmem:[%s4 + $0x48] sm:$0xff] %v2674
  %2707 = vst [vmem:[%s4 + $0x50] sm:$0xff] %v2675
  %2708 = vst [vmem:[%s4 + $0x58] sm:$0xff] %v2676
  %2709 = vst [vmem:[%s4 + $0x60] sm:$0xff] %v2677
  %2710 = vst [vmem:[%s4 + $0x68] sm:$0xff] %v2678
  %2711 = vst [vmem:[%s4 + $0x70] sm:$0xff] %v2679
  %2712 = vst [vmem:[%s4 + $0x78] sm:$0xff] %v2680
  %2713 = vst [vmem:[%s4 + $0x80] sm:$0xff] %v2681
  %2714 = vst [vmem:[%s4 + $0x88] sm:$0xff] %v2682
  %2715 = vst [vmem:[%s4 + $0x90] sm:$0xff] %v2683
  %2716 = vst [vmem:[%s4 + $0x98] sm:$0xff] %v2684
  %2717 = vst [vmem:[%s4 + $0xa0] sm:$0xff] %v2685
  %2718 = vst [vmem:[%s4 + $0xa8] sm:$0xff] %v2686
  %2719 = vst [vmem:[%s4 + $0xb0] sm:$0xff] %v2687
  %2720 = vst [vmem:[%s4 + $0xb8] sm:$0xff] %v2688
  %2721 = vst [vmem:[%s4 + $0xc0] sm:$0xff] %v2689
  %2722 = vst [vmem:[%s4 + $0xc8] sm:$0xff] %v2690
  %2723 = vst [vmem:[%s4 + $0xd0] sm:$0xff] %v2691
  %2724 = vst [vmem:[%s4 + $0xd8] sm:$0xff] %v2692
  %2725 = vst [vmem:[%s4 + $0xe0] sm:$0xff] %v2693
  %2726 = vst [vmem:[%s4 + $0xe8] sm:$0xff] %v2694
  %2727 = vst [vmem:[%s4 + $0xf0] sm:$0xff] %v2695
  %2728 = vst [vmem:[%s4 + $0xf8] sm:$0xff] %v2696
  // Predicated region
  $region18: #{mmd_gcn_forward_resident.1} parent=0 // pred_check
    _
  $region19: #{mmd_gcn_forward_resident.1} parent=0 // pred_check_branch
    %2730 = sbr.rel (0) target = $region21
  $region20: #{mmd_gcn_forward_resident.1} parent=0 // pred_region
    _
  $region21: #{mmd_gcn_forward_resident.1} parent=0 // pred_fallthru
    _
  // Predicated region
  $region22: #{mmd_gcn_forward_resident.1} parent=0 // pred_check
    _
  $region23: #{mmd_gcn_forward_resident.1} parent=0 // pred_check_branch
    %2732 = sbr.rel (0) target = $region25
  $region24: #{mmd_gcn_forward_resident.1} parent=0 // pred_region
    _
  $region25: #{mmd_gcn_forward_resident.1} parent=0 // pred_fallthru
    _

</llo_original>
